<compile_context>
chip_gen: v6e
topology: v6e:2x2x1
jax: 0.10.0
libtpu: 0.0.40
codegen_flags: <defaults>
</compile_context>

<pallas_src>
import functools

import jax
import jax.numpy as jnp
from jax import lax
from jax.experimental import pallas as pl
from jax.experimental.pallas import tpu as pltpu


def _sortpool_kernel(x_dn_ref, x_nd_ref, out_ref, *, k):
    G, D, N = x_dn_ref.shape

    x_dn = x_dn_ref[...].astype(jnp.float32)      # (G, D, N): nodes on lanes
    x_nd = x_nd_ref[...].astype(jnp.float32)      # (G, N, D): nodes on sublanes

    # --- 1) per-node ascending sort along features (stable counting sort) ---
    frow = lax.broadcasted_iota(jnp.int32, (G, D, N), 1)       # feature index i
    ranks = jnp.zeros((G, D, N), jnp.int32)
    # TODO(synk): for large D, move these unrolled loops into lax.fori_loop to
    # bound vreg live ranges / compile time (D is small here, unroll is fine).
    for j in range(D):
        xj = x_dn[:, j:j + 1, :]                               # (G, 1, N)
        less = xj < x_dn
        tie_before = (xj == x_dn) & (j < frow)
        ranks = ranks + (less | tie_before).astype(jnp.int32)

    # scatter values to their sorted slot: sorted[g, ranks[g,i,m], m] = x[g,i,m]
    sorted_dn = jnp.zeros((G, D, N), jnp.float32)
    for i in range(D):
        xi = x_dn[:, i:i + 1, :]                               # (G, 1, N)
        ri = ranks[:, i:i + 1, :]                              # (G, 1, N)
        sorted_dn = sorted_dn + jnp.where(frow == ri, xi, 0.0)

    # --- 2) per-graph descending, stable node rank by max feature value -----
    key_lane = jnp.max(x_dn, axis=1, keepdims=True)            # (G, 1, N): key[m]
    key_sub = jnp.max(x_nd, axis=2, keepdims=True)             # (G, N, 1): key[n]
    n_idx = lax.broadcasted_iota(jnp.int32, (G, N, N), 1)
    m_idx = lax.broadcasted_iota(jnp.int32, (G, N, N), 2)
    # beats[g, n, m] <=> node n is ranked strictly before node m.
    beats = (key_sub > key_lane) | ((key_sub == key_lane) & (n_idx < m_idx))
    rank = jnp.sum(beats.astype(jnp.int32), axis=1, keepdims=True)  # (G, 1, N)

    # --- 3) gather the sorted features of the k best-ranked nodes -----------
    # out[g, r*D + d] = sorted_dn[g, d, m] for the node m with rank[g, m] == r.
    tiled = jnp.concatenate([sorted_dn] * k, axis=1)           # (G, k*D, N)
    c_idx = lax.broadcasted_iota(jnp.int32, (G, k * D, N), 1)
    lo = rank * D                                              # (G, 1, N)
    sel = jnp.where((c_idx >= lo) & (c_idx < lo + D), tiled, 0.0)
    out_ref[...] = jnp.sum(sel, axis=2).astype(out_ref.dtype)  # (G, k*D)


def _choose_graphs_per_step(B, N, D, k, vmem_budget_bytes=8 * 1024 * 1024):
    """Largest divisor of B that fits a conservative VMEM budget (v7x-safe)
    while keeping >= 2 grid steps so both v7x TensorCores get work."""
    per_graph = 4 * (8 * D * N + 2 * N * D + 3 * N * N + 3 * k * D * N + 2 * k * D)
    cap = max(1, min(512, vmem_budget_bytes // max(per_graph, 1)))
    best = 1
    for g in range(1, B + 1):
        if g > cap:
            break
        if B % g == 0 and (B // g >= 2 or B == 1):
            best = g
    return best


def sort_pooling(feat, k):
    """feat: (B, N, D) — B equal-sized graphs with N nodes each. Returns (B, k*D)."""
    B, N, D = feat.shape
    assert N >= k, "each graph must have at least k nodes"
    # TODO(synk): ragged batches (per-graph node counts / zero padding when a
    # graph has fewer than k nodes, as DGL's topk_nodes does) are not handled.
    G = _choose_graphs_per_step(B, N, D, k)
    num_blocks = B // G

    # Second input view: features on sublanes, nodes on lanes. Pure layout
    # plumbing, done once in XLA outside the kernel.
    feat_dn = jnp.transpose(feat, (0, 2, 1))                   # (B, D, N)

    kernel = functools.partial(_sortpool_kernel, k=k)
    out = pl.pallas_call(
        kernel,
        out_shape=jax.ShapeDtypeStruct((num_blocks, G, k * D), feat.dtype),
        grid_spec=pltpu.PrefetchScalarGridSpec(
            num_scalar_prefetch=0,
            grid=(num_blocks,),
            in_specs=[
                pl.BlockSpec((G, D, N), lambda b: (b, 0, 0)),  # nodes on lanes
                pl.BlockSpec((G, N, D), lambda b: (b, 0, 0)),  # nodes on sublanes
            ],
            out_specs=pl.BlockSpec((None, G, k * D), lambda b: (b, 0, 0)),
        ),
        compiler_params=pltpu.CompilerParams(
            dimension_semantics=("parallel",),
            vmem_limit_bytes=32 * 1024 * 1024,
        ),
    )(feat_dn, feat)
    return out.reshape(B, k * D)  # free metadata reshape in XLA


if __name__ == "__main__":
    B, N, D, k = 16, 16, 8, 4
    rng = jax.random.PRNGKey(0)
    feat = jax.random.uniform(rng, (B, N, D), dtype=jnp.float32)

    out = jax.block_until_ready(sort_pooling(feat, k))

    # pure-JAX reference for the same semantics
    srt = jnp.sort(feat, axis=-1)
    keys = srt[..., -1]
    order = jnp.argsort(-keys, axis=-1)[:, :k]
    ref = jnp.take_along_axis(srt, order[:, :, None], axis=1).reshape(B, k * D)

    assert out.shape == (B, k * D)
    assert jnp.allclose(out, ref, atol=1e-5), (out, ref)
    print("KERNEL_OK")
</pallas_src>

<mosaic_0001>
module attributes {stable_mosaic.version = 11 : i64} {
  func.func @_sortpool_kernel(%arg0: i32, %arg1: memref<8x8x16xf32, #tpu.memory_space<vmem>>, %arg2: memref<8x16x8xf32, #tpu.memory_space<vmem>>, %arg3: memref<1x8x32xf32, #tpu.memory_space<vmem>>) attributes {dimension_semantics = [#tpu.dimension_semantics<parallel>], iteration_bounds = array<i64: 2>, scalar_prefetch = 0 : i64, scratch_operands = 0 : i64, tpu.core_type = #tpu.core_type<tc>, window_params = [{transform_indices = @transform_0, window_bounds = array<i64: 8, 8, 16>}, {transform_indices = @transform_1, window_bounds = array<i64: 8, 16, 8>}, {transform_indices = @transform_2, window_bounds = array<i64: 1, 8, 32>}]} {
    %c0 = arith.constant 0 : index
    %c0_0 = arith.constant 0 : index
    %c0_1 = arith.constant 0 : index
    %0 = vector.load %arg1[%c0, %c0_0, %c0_1] : memref<8x8x16xf32, #tpu.memory_space<vmem>>, vector<8x8x16xf32>
    %c0_2 = arith.constant 0 : index
    %c0_3 = arith.constant 0 : index
    %c0_4 = arith.constant 0 : index
    %1 = vector.load %arg2[%c0_2, %c0_3, %c0_4] : memref<8x16x8xf32, #tpu.memory_space<vmem>>, vector<8x16x8xf32>
    %2 = tpu.iota {dimensions = array<i32: 1>} : vector<8x8x16xi32>
    %c0_i32 = arith.constant 0 : i32
    %3 = vector.broadcast %c0_i32 : i32 to vector<8x8x16xi32>
    %4 = vector.extract_strided_slice %0 {offsets = [0, 0, 0], sizes = [8, 1, 16], strides = [1, 1, 1]} : vector<8x8x16xf32> to vector<8x1x16xf32>
    %5 = vector.broadcast %4 : vector<8x1x16xf32> to vector<8x8x16xf32>
    %6 = arith.cmpf olt, %5, %0 : vector<8x8x16xf32>
    %7 = vector.broadcast %4 : vector<8x1x16xf32> to vector<8x8x16xf32>
    %8 = arith.cmpf oeq, %7, %0 : vector<8x8x16xf32>
    %c0_i32_5 = arith.constant 0 : i32
    %9 = vector.broadcast %c0_i32_5 : i32 to vector<8x8x16xi32>
    %10 = arith.cmpi sgt, %2, %9 : vector<8x8x16xi32>
    %11 = arith.andi %8, %10 : vector<8x8x16xi1>
    %12 = arith.ori %6, %11 : vector<8x8x16xi1>
    %13 = arith.extui %12 : vector<8x8x16xi1> to vector<8x8x16xi32>
    %14 = arith.addi %3, %13 : vector<8x8x16xi32>
    %15 = vector.extract_strided_slice %0 {offsets = [0, 1, 0], sizes = [8, 1, 16], strides = [1, 1, 1]} : vector<8x8x16xf32> to vector<8x1x16xf32>
    %16 = vector.broadcast %15 : vector<8x1x16xf32> to vector<8x8x16xf32>
    %17 = arith.cmpf olt, %16, %0 : vector<8x8x16xf32>
    %18 = vector.broadcast %15 : vector<8x1x16xf32> to vector<8x8x16xf32>
    %19 = arith.cmpf oeq, %18, %0 : vector<8x8x16xf32>
    %c1_i32 = arith.constant 1 : i32
    %20 = vector.broadcast %c1_i32 : i32 to vector<8x8x16xi32>
    %21 = arith.cmpi sgt, %2, %20 : vector<8x8x16xi32>
    %22 = arith.andi %19, %21 : vector<8x8x16xi1>
    %23 = arith.ori %17, %22 : vector<8x8x16xi1>
    %24 = arith.extui %23 : vector<8x8x16xi1> to vector<8x8x16xi32>
    %25 = arith.addi %14, %24 : vector<8x8x16xi32>
    %26 = vector.extract_strided_slice %0 {offsets = [0, 2, 0], sizes = [8, 1, 16], strides = [1, 1, 1]} : vector<8x8x16xf32> to vector<8x1x16xf32>
    %27 = vector.broadcast %26 : vector<8x1x16xf32> to vector<8x8x16xf32>
    %28 = arith.cmpf olt, %27, %0 : vector<8x8x16xf32>
    %29 = vector.broadcast %26 : vector<8x1x16xf32> to vector<8x8x16xf32>
    %30 = arith.cmpf oeq, %29, %0 : vector<8x8x16xf32>
    %c2_i32 = arith.constant 2 : i32
    %31 = vector.broadcast %c2_i32 : i32 to vector<8x8x16xi32>
    %32 = arith.cmpi sgt, %2, %31 : vector<8x8x16xi32>
    %33 = arith.andi %30, %32 : vector<8x8x16xi1>
    %34 = arith.ori %28, %33 : vector<8x8x16xi1>
    %35 = arith.extui %34 : vector<8x8x16xi1> to vector<8x8x16xi32>
    %36 = arith.addi %25, %35 : vector<8x8x16xi32>
    %37 = vector.extract_strided_slice %0 {offsets = [0, 3, 0], sizes = [8, 1, 16], strides = [1, 1, 1]} : vector<8x8x16xf32> to vector<8x1x16xf32>
    %38 = vector.broadcast %37 : vector<8x1x16xf32> to vector<8x8x16xf32>
    %39 = arith.cmpf olt, %38, %0 : vector<8x8x16xf32>
    %40 = vector.broadcast %37 : vector<8x1x16xf32> to vector<8x8x16xf32>
    %41 = arith.cmpf oeq, %40, %0 : vector<8x8x16xf32>
    %c3_i32 = arith.constant 3 : i32
    %42 = vector.broadcast %c3_i32 : i32 to vector<8x8x16xi32>
    %43 = arith.cmpi sgt, %2, %42 : vector<8x8x16xi32>
    %44 = arith.andi %41, %43 : vector<8x8x16xi1>
    %45 = arith.ori %39, %44 : vector<8x8x16xi1>
    %46 = arith.extui %45 : vector<8x8x16xi1> to vector<8x8x16xi32>
    %47 = arith.addi %36, %46 : vector<8x8x16xi32>
    %48 = vector.extract_strided_slice %0 {offsets = [0, 4, 0], sizes = [8, 1, 16], strides = [1, 1, 1]} : vector<8x8x16xf32> to vector<8x1x16xf32>
    %49 = vector.broadcast %48 : vector<8x1x16xf32> to vector<8x8x16xf32>
    %50 = arith.cmpf olt, %49, %0 : vector<8x8x16xf32>
    %51 = vector.broadcast %48 : vector<8x1x16xf32> to vector<8x8x16xf32>
    %52 = arith.cmpf oeq, %51, %0 : vector<8x8x16xf32>
    %c4_i32 = arith.constant 4 : i32
    %53 = vector.broadcast %c4_i32 : i32 to vector<8x8x16xi32>
    %54 = arith.cmpi sgt, %2, %53 : vector<8x8x16xi32>
    %55 = arith.andi %52, %54 : vector<8x8x16xi1>
    %56 = arith.ori %50, %55 : vector<8x8x16xi1>
    %57 = arith.extui %56 : vector<8x8x16xi1> to vector<8x8x16xi32>
    %58 = arith.addi %47, %57 : vector<8x8x16xi32>
    %59 = vector.extract_strided_slice %0 {offsets = [0, 5, 0], sizes = [8, 1, 16], strides = [1, 1, 1]} : vector<8x8x16xf32> to vector<8x1x16xf32>
    %60 = vector.broadcast %59 : vector<8x1x16xf32> to vector<8x8x16xf32>
    %61 = arith.cmpf olt, %60, %0 : vector<8x8x16xf32>
    %62 = vector.broadcast %59 : vector<8x1x16xf32> to vector<8x8x16xf32>
    %63 = arith.cmpf oeq, %62, %0 : vector<8x8x16xf32>
    %c5_i32 = arith.constant 5 : i32
    %64 = vector.broadcast %c5_i32 : i32 to vector<8x8x16xi32>
    %65 = arith.cmpi sgt, %2, %64 : vector<8x8x16xi32>
    %66 = arith.andi %63, %65 : vector<8x8x16xi1>
    %67 = arith.ori %61, %66 : vector<8x8x16xi1>
    %68 = arith.extui %67 : vector<8x8x16xi1> to vector<8x8x16xi32>
    %69 = arith.addi %58, %68 : vector<8x8x16xi32>
    %70 = vector.extract_strided_slice %0 {offsets = [0, 6, 0], sizes = [8, 1, 16], strides = [1, 1, 1]} : vector<8x8x16xf32> to vector<8x1x16xf32>
    %71 = vector.broadcast %70 : vector<8x1x16xf32> to vector<8x8x16xf32>
    %72 = arith.cmpf olt, %71, %0 : vector<8x8x16xf32>
    %73 = vector.broadcast %70 : vector<8x1x16xf32> to vector<8x8x16xf32>
    %74 = arith.cmpf oeq, %73, %0 : vector<8x8x16xf32>
    %c6_i32 = arith.constant 6 : i32
    %75 = vector.broadcast %c6_i32 : i32 to vector<8x8x16xi32>
    %76 = arith.cmpi sgt, %2, %75 : vector<8x8x16xi32>
    %77 = arith.andi %74, %76 : vector<8x8x16xi1>
    %78 = arith.ori %72, %77 : vector<8x8x16xi1>
    %79 = arith.extui %78 : vector<8x8x16xi1> to vector<8x8x16xi32>
    %80 = arith.addi %69, %79 : vector<8x8x16xi32>
    %81 = vector.extract_strided_slice %0 {offsets = [0, 7, 0], sizes = [8, 1, 16], strides = [1, 1, 1]} : vector<8x8x16xf32> to vector<8x1x16xf32>
    %82 = vector.broadcast %81 : vector<8x1x16xf32> to vector<8x8x16xf32>
    %83 = arith.cmpf olt, %82, %0 : vector<8x8x16xf32>
    %84 = vector.broadcast %81 : vector<8x1x16xf32> to vector<8x8x16xf32>
    %85 = arith.cmpf oeq, %84, %0 : vector<8x8x16xf32>
    %c7_i32 = arith.constant 7 : i32
    %86 = vector.broadcast %c7_i32 : i32 to vector<8x8x16xi32>
    %87 = arith.cmpi sgt, %2, %86 : vector<8x8x16xi32>
    %88 = arith.andi %85, %87 : vector<8x8x16xi1>
    %89 = arith.ori %83, %88 : vector<8x8x16xi1>
    %90 = arith.extui %89 : vector<8x8x16xi1> to vector<8x8x16xi32>
    %91 = arith.addi %80, %90 : vector<8x8x16xi32>
    %cst = arith.constant 0.000000e+00 : f32
    %92 = vector.broadcast %cst : f32 to vector<8x8x16xf32>
    %93 = vector.extract_strided_slice %0 {offsets = [0, 0, 0], sizes = [8, 1, 16], strides = [1, 1, 1]} : vector<8x8x16xf32> to vector<8x1x16xf32>
    %94 = vector.extract_strided_slice %91 {offsets = [0, 0, 0], sizes = [8, 1, 16], strides = [1, 1, 1]} : vector<8x8x16xi32> to vector<8x1x16xi32>
    %95 = vector.broadcast %94 : vector<8x1x16xi32> to vector<8x8x16xi32>
    %96 = arith.cmpi eq, %2, %95 : vector<8x8x16xi32>
    %cst_6 = arith.constant 0.000000e+00 : f32
    %97 = vector.shape_cast %93 : vector<8x1x16xf32> to vector<8x1x16xf32>
    %98 = vector.broadcast %97 : vector<8x1x16xf32> to vector<8x8x16xf32>
    %99 = vector.broadcast %cst_6 : f32 to vector<8x8x16xf32>
    %100 = arith.select %96, %98, %99 : vector<8x8x16xi1>, vector<8x8x16xf32>
    %101 = arith.addf %92, %100 : vector<8x8x16xf32>
    %102 = vector.extract_strided_slice %0 {offsets = [0, 1, 0], sizes = [8, 1, 16], strides = [1, 1, 1]} : vector<8x8x16xf32> to vector<8x1x16xf32>
    %103 = vector.extract_strided_slice %91 {offsets = [0, 1, 0], sizes = [8, 1, 16], strides = [1, 1, 1]} : vector<8x8x16xi32> to vector<8x1x16xi32>
    %104 = vector.broadcast %103 : vector<8x1x16xi32> to vector<8x8x16xi32>
    %105 = arith.cmpi eq, %2, %104 : vector<8x8x16xi32>
    %cst_7 = arith.constant 0.000000e+00 : f32
    %106 = vector.shape_cast %102 : vector<8x1x16xf32> to vector<8x1x16xf32>
    %107 = vector.broadcast %106 : vector<8x1x16xf32> to vector<8x8x16xf32>
    %108 = vector.broadcast %cst_7 : f32 to vector<8x8x16xf32>
    %109 = arith.select %105, %107, %108 : vector<8x8x16xi1>, vector<8x8x16xf32>
    %110 = arith.addf %101, %109 : vector<8x8x16xf32>
    %111 = vector.extract_strided_slice %0 {offsets = [0, 2, 0], sizes = [8, 1, 16], strides = [1, 1, 1]} : vector<8x8x16xf32> to vector<8x1x16xf32>
    %112 = vector.extract_strided_slice %91 {offsets = [0, 2, 0], sizes = [8, 1, 16], strides = [1, 1, 1]} : vector<8x8x16xi32> to vector<8x1x16xi32>
    %113 = vector.broadcast %112 : vector<8x1x16xi32> to vector<8x8x16xi32>
    %114 = arith.cmpi eq, %2, %113 : vector<8x8x16xi32>
    %cst_8 = arith.constant 0.000000e+00 : f32
    %115 = vector.shape_cast %111 : vector<8x1x16xf32> to vector<8x1x16xf32>
    %116 = vector.broadcast %115 : vector<8x1x16xf32> to vector<8x8x16xf32>
    %117 = vector.broadcast %cst_8 : f32 to vector<8x8x16xf32>
    %118 = arith.select %114, %116, %117 : vector<8x8x16xi1>, vector<8x8x16xf32>
    %119 = arith.addf %110, %118 : vector<8x8x16xf32>
    %120 = vector.extract_strided_slice %0 {offsets = [0, 3, 0], sizes = [8, 1, 16], strides = [1, 1, 1]} : vector<8x8x16xf32> to vector<8x1x16xf32>
    %121 = vector.extract_strided_slice %91 {offsets = [0, 3, 0], sizes = [8, 1, 16], strides = [1, 1, 1]} : vector<8x8x16xi32> to vector<8x1x16xi32>
    %122 = vector.broadcast %121 : vector<8x1x16xi32> to vector<8x8x16xi32>
    %123 = arith.cmpi eq, %2, %122 : vector<8x8x16xi32>
    %cst_9 = arith.constant 0.000000e+00 : f32
    %124 = vector.shape_cast %120 : vector<8x1x16xf32> to vector<8x1x16xf32>
    %125 = vector.broadcast %124 : vector<8x1x16xf32> to vector<8x8x16xf32>
    %126 = vector.broadcast %cst_9 : f32 to vector<8x8x16xf32>
    %127 = arith.select %123, %125, %126 : vector<8x8x16xi1>, vector<8x8x16xf32>
    %128 = arith.addf %119, %127 : vector<8x8x16xf32>
    %129 = vector.extract_strided_slice %0 {offsets = [0, 4, 0], sizes = [8, 1, 16], strides = [1, 1, 1]} : vector<8x8x16xf32> to vector<8x1x16xf32>
    %130 = vector.extract_strided_slice %91 {offsets = [0, 4, 0], sizes = [8, 1, 16], strides = [1, 1, 1]} : vector<8x8x16xi32> to vector<8x1x16xi32>
    %131 = vector.broadcast %130 : vector<8x1x16xi32> to vector<8x8x16xi32>
    %132 = arith.cmpi eq, %2, %131 : vector<8x8x16xi32>
    %cst_10 = arith.constant 0.000000e+00 : f32
    %133 = vector.shape_cast %129 : vector<8x1x16xf32> to vector<8x1x16xf32>
    %134 = vector.broadcast %133 : vector<8x1x16xf32> to vector<8x8x16xf32>
    %135 = vector.broadcast %cst_10 : f32 to vector<8x8x16xf32>
    %136 = arith.select %132, %134, %135 : vector<8x8x16xi1>, vector<8x8x16xf32>
    %137 = arith.addf %128, %136 : vector<8x8x16xf32>
    %138 = vector.extract_strided_slice %0 {offsets = [0, 5, 0], sizes = [8, 1, 16], strides = [1, 1, 1]} : vector<8x8x16xf32> to vector<8x1x16xf32>
    %139 = vector.extract_strided_slice %91 {offsets = [0, 5, 0], sizes = [8, 1, 16], strides = [1, 1, 1]} : vector<8x8x16xi32> to vector<8x1x16xi32>
    %140 = vector.broadcast %139 : vector<8x1x16xi32> to vector<8x8x16xi32>
    %141 = arith.cmpi eq, %2, %140 : vector<8x8x16xi32>
    %cst_11 = arith.constant 0.000000e+00 : f32
    %142 = vector.shape_cast %138 : vector<8x1x16xf32> to vector<8x1x16xf32>
    %143 = vector.broadcast %142 : vector<8x1x16xf32> to vector<8x8x16xf32>
    %144 = vector.broadcast %cst_11 : f32 to vector<8x8x16xf32>
    %145 = arith.select %141, %143, %144 : vector<8x8x16xi1>, vector<8x8x16xf32>
    %146 = arith.addf %137, %145 : vector<8x8x16xf32>
    %147 = vector.extract_strided_slice %0 {offsets = [0, 6, 0], sizes = [8, 1, 16], strides = [1, 1, 1]} : vector<8x8x16xf32> to vector<8x1x16xf32>
    %148 = vector.extract_strided_slice %91 {offsets = [0, 6, 0], sizes = [8, 1, 16], strides = [1, 1, 1]} : vector<8x8x16xi32> to vector<8x1x16xi32>
    %149 = vector.broadcast %148 : vector<8x1x16xi32> to vector<8x8x16xi32>
    %150 = arith.cmpi eq, %2, %149 : vector<8x8x16xi32>
    %cst_12 = arith.constant 0.000000e+00 : f32
    %151 = vector.shape_cast %147 : vector<8x1x16xf32> to vector<8x1x16xf32>
    %152 = vector.broadcast %151 : vector<8x1x16xf32> to vector<8x8x16xf32>
    %153 = vector.broadcast %cst_12 : f32 to vector<8x8x16xf32>
    %154 = arith.select %150, %152, %153 : vector<8x8x16xi1>, vector<8x8x16xf32>
    %155 = arith.addf %146, %154 : vector<8x8x16xf32>
    %156 = vector.extract_strided_slice %0 {offsets = [0, 7, 0], sizes = [8, 1, 16], strides = [1, 1, 1]} : vector<8x8x16xf32> to vector<8x1x16xf32>
    %157 = vector.extract_strided_slice %91 {offsets = [0, 7, 0], sizes = [8, 1, 16], strides = [1, 1, 1]} : vector<8x8x16xi32> to vector<8x1x16xi32>
    %158 = vector.broadcast %157 : vector<8x1x16xi32> to vector<8x8x16xi32>
    %159 = arith.cmpi eq, %2, %158 : vector<8x8x16xi32>
    %cst_13 = arith.constant 0.000000e+00 : f32
    %160 = vector.shape_cast %156 : vector<8x1x16xf32> to vector<8x1x16xf32>
    %161 = vector.broadcast %160 : vector<8x1x16xf32> to vector<8x8x16xf32>
    %162 = vector.broadcast %cst_13 : f32 to vector<8x8x16xf32>
    %163 = arith.select %159, %161, %162 : vector<8x8x16xi1>, vector<8x8x16xf32>
    %164 = arith.addf %155, %163 : vector<8x8x16xf32>
    %cst_14 = arith.constant dense<0xFF800000> : vector<8x16xf32>
    %165 = vector.multi_reduction <maximumf>, %0, %cst_14 [1] : vector<8x8x16xf32> to vector<8x16xf32>
    %166 = vector.shape_cast %165 : vector<8x16xf32> to vector<8x1x16xf32>
    %cst_15 = arith.constant dense<0xFF800000> : vector<8x16xf32>
    %167 = vector.multi_reduction <maximumf>, %1, %cst_15 [2] : vector<8x16x8xf32> to vector<8x16xf32>
    %168 = vector.shape_cast %167 : vector<8x16xf32> to vector<8x16x1xf32>
    %169 = tpu.iota {dimensions = array<i32: 1>} : vector<8x16x16xi32>
    %170 = tpu.iota {dimensions = array<i32: 2>} : vector<8x16x16xi32>
    %171 = vector.broadcast %168 : vector<8x16x1xf32> to vector<8x16x16xf32>
    %172 = vector.broadcast %166 : vector<8x1x16xf32> to vector<8x16x16xf32>
    %173 = arith.cmpf ogt, %171, %172 : vector<8x16x16xf32>
    %174 = vector.broadcast %168 : vector<8x16x1xf32> to vector<8x16x16xf32>
    %175 = vector.broadcast %166 : vector<8x1x16xf32> to vector<8x16x16xf32>
    %176 = arith.cmpf oeq, %174, %175 : vector<8x16x16xf32>
    %177 = arith.cmpi slt, %169, %170 : vector<8x16x16xi32>
    %178 = arith.andi %176, %177 : vector<8x16x16xi1>
    %179 = arith.ori %173, %178 : vector<8x16x16xi1>
    %180 = arith.extui %179 : vector<8x16x16xi1> to vector<8x16x16xi32>
    %cst_16 = arith.constant dense<0> : vector<8x16xi32>
    %181 = vector.multi_reduction <add>, %180, %cst_16 [1] : vector<8x16x16xi32> to vector<8x16xi32>
    %182 = vector.shape_cast %181 : vector<8x16xi32> to vector<8x1x16xi32>
    %183 = tpu.concatenate %164, %164, %164, %164 in 1 : vector<8x8x16xf32>, vector<8x8x16xf32>, vector<8x8x16xf32>, vector<8x8x16xf32> -> vector<8x32x16xf32>
    %184 = tpu.iota {dimensions = array<i32: 1>} : vector<8x32x16xi32>
    %c8_i32 = arith.constant 8 : i32
    %185 = vector.broadcast %c8_i32 : i32 to vector<8x1x16xi32>
    %186 = arith.muli %182, %185 : vector<8x1x16xi32>
    %187 = vector.broadcast %186 : vector<8x1x16xi32> to vector<8x32x16xi32>
    %188 = arith.cmpi sge, %184, %187 : vector<8x32x16xi32>
    %c8_i32_17 = arith.constant 8 : i32
    %189 = vector.broadcast %c8_i32_17 : i32 to vector<8x1x16xi32>
    %190 = arith.addi %186, %189 : vector<8x1x16xi32>
    %191 = vector.broadcast %190 : vector<8x1x16xi32> to vector<8x32x16xi32>
    %192 = arith.cmpi slt, %184, %191 : vector<8x32x16xi32>
    %193 = arith.andi %188, %192 : vector<8x32x16xi1>
    %cst_18 = arith.constant 0.000000e+00 : f32
    %194 = vector.broadcast %cst_18 : f32 to vector<8x32x16xf32>
    %195 = arith.select %193, %183, %194 : vector<8x32x16xi1>, vector<8x32x16xf32>
    %cst_19 = arith.constant dense<0.000000e+00> : vector<8x32xf32>
    %196 = vector.multi_reduction <add>, %195, %cst_19 [2] : vector<8x32x16xf32> to vector<8x32xf32>
    %c0_20 = arith.constant 0 : index
    %c0_21 = arith.constant 0 : index
    %c0_22 = arith.constant 0 : index
    %197 = vector.load %arg3[%c0_20, %c0_21, %c0_22] : memref<1x8x32xf32, #tpu.memory_space<vmem>>, vector<1x8x32xf32>
    %198 = vector.shape_cast %197 : vector<1x8x32xf32> to vector<8x32xf32>
    %199 = vector.shape_cast %196 : vector<8x32xf32> to vector<1x8x32xf32>
    tpu.vector_store %arg3[%c0_20, %c0_21, %c0_22], %199 {strides = array<i32>} : memref<1x8x32xf32, #tpu.memory_space<vmem>>, vector<1x8x32xf32>,
    return
  }
  func.func @transform_0(%arg0: i32) -> (i32, i32, i32) {
    %c0_i32 = arith.constant 0 : i32
    %c0_i32_0 = arith.constant 0 : i32
    %c0_i32_1 = arith.constant 0 : i32
    return %arg0, %c0_i32, %c0_i32_0 : i32, i32, i32
  }
  func.func @transform_1(%arg0: i32) -> (i32, i32, i32) {
    %c0_i32 = arith.constant 0 : i32
    %c0_i32_0 = arith.constant 0 : i32
    %c0_i32_1 = arith.constant 0 : i32
    return %arg0, %c0_i32, %c0_i32_0 : i32, i32, i32
  }
  func.func @transform_2(%arg0: i32) -> (i32, i32, i32) {
    %c0_i32 = arith.constant 0 : i32
    %c0_i32_0 = arith.constant 0 : i32
    %c0_i32_1 = arith.constant 0 : i32
    return %arg0, %c0_i32, %c0_i32_0 : i32, i32, i32
  }
}

</mosaic_0001>

<llo_original>
// kernel: tpu_custom_call.1
$region0: #{tpu_custom_call.1}
  #allocation0 [shape = 'u32[]', space=smem, size = 0x4, offset = 0x4, fixed_abs, tag = 'smem constant byte address 0x4 - core index']
  #allocation1 [shape = 'u32[144,128]{1,0:T(1,128)}', space=vmem, size = 0x12000, scoped, tag = 'internal scratch']
  %s0 = inlined_call_operand.vmem [shape: f32[16,8,16], index: 0, kind: input, shape index: {}]
  %s1 = inlined_call_operand.vmem [shape: f32[16,16,8], index: 1, kind: input, shape index: {}]
  %s2 = inlined_call_operand.hbm [shape: f32[2,8,32], index: 2, kind: output, shape index: {}]
  %s3 = sld [smem:[#allocation0]]
  $region41: #{tpu_custom_call.1} parent=0
    _
  %s5 = ssub.s32 1, %s3
  %s6 = scalar_select 0, %s5, %s3
  $region1: #{tpu_custom_call.1} parent=0
    #allocation2 [shape = 'u8[8192]{0}', space=vmem, size = 0x2000, scoped, tag = 'output window, operand 0']
    #allocation3 [shape = 's32[2]{0}', space=sflag, size = 0x8, scoped, tag = 'scoped memory for tpu_custom_call.1']
    %7 = vsyncpa [#allocation3], 0
    %s8 = scalar_lea.sflag [#allocation3], 1
    %9 = vsyncpa %s8, 0
    loop: start=0, step=1, limit=4
    $region2: #{tpu_custom_call.1} parent=1 // loop_pre_header
      _
    $region3: #{tpu_custom_call.1} parent=1 // loop_header
      %s11 = sphi 0, %s15
      %p12 = scmp.ge.s32.totalorder %s11, 4
      %s21 = sphi 0, %s23
      %s24 = sphi 0, %s21
      %s25 = sphi 0, %s24
      %s41 = sphi 0, %s25
      %s47 = sphi 0, %s49
      %s50 = sphi 0, %s47
      %s51 = sphi 0, %s50
      %s67 = sphi 0, %s51
      %s73 = sphi 0, %s75
      %s76 = sphi 0, %s73
      %s77 = sphi 0, %s76
      %s93 = sphi 0, %s77
    $region4: #{tpu_custom_call.1} parent=1 // loop_header_branch
      %14 = sbr.rel (%p12) target = $region8
    $region5: #{tpu_custom_call.1} parent=1 // loop_body
      %s16 = ssub.s32 %s11, 1
      %s17 = ssub.s32 %s11, 2
      %s18 = sadd.s32 %s11, 1
      %s19 = ssub.s32 %s11, %s18
      %p20 = scmp.eq.s32.totalorder %s19, 0
      %s22 = sadd.s32 %s21, 1
      %s23 = scalar_select %p20, %s21, %s22
      %p26 = pneg %p20
      %p27 = scmp.eq.s32.totalorder %s11, 1
      %p28 = por %p26, %p27
      %p29 = scmp.ne.s32.totalorder %s21, %s24
      %p30 = scmp.eq.s32.totalorder %s11, 0
      %p31 = por %p29, %p30
      %p32 = scmp.ne.s32.totalorder %s21, %s24
      %p33 = scmp.eq.s32.totalorder %s16, 1
      %p34 = por %p32, %p33
      %p35 = scmp.ne.s32.totalorder %s24, %s25
      %p36 = scmp.eq.s32.totalorder %s16, 0
      %p37 = por %p35, %p36
      %p38 = scmp.ne.s32.totalorder %s24, %s25
      %p39 = scmp.eq.s32.totalorder %s17, 1
      %p40 = por %p38, %p39
      %p42 = scmp.ne.s32.totalorder %s25, %s41
      %p43 = scmp.eq.s32.totalorder %s17, 0
      %p44 = por %p42, %p43
      %s45 = ssub.s32 %s11, %s18
      %p46 = scmp.eq.s32.totalorder %s45, 0
      %s48 = sadd.s32 %s47, 1
      %s49 = scalar_select %p46, %s47, %s48
      %p52 = pneg %p46
      %p53 = scmp.eq.s32.totalorder %s11, 1
      %p54 = por %p52, %p53
      %p55 = scmp.ne.s32.totalorder %s47, %s50
      %p56 = scmp.eq.s32.totalorder %s11, 0
      %p57 = por %p55, %p56
      %p58 = scmp.ne.s32.totalorder %s47, %s50
      %p59 = scmp.eq.s32.totalorder %s16, 1
      %p60 = por %p58, %p59
      %p61 = scmp.ne.s32.totalorder %s50, %s51
      %p62 = scmp.eq.s32.totalorder %s16, 0
      %p63 = por %p61, %p62
      %p64 = scmp.ne.s32.totalorder %s50, %s51
      %p65 = scmp.eq.s32.totalorder %s17, 1
      %p66 = por %p64, %p65
      %p68 = scmp.ne.s32.totalorder %s51, %s67
      %p69 = scmp.eq.s32.totalorder %s17, 0
      %p70 = por %p68, %p69
      %s71 = ssub.s32 %s11, %s18
      %p72 = scmp.eq.s32.totalorder %s71, 0
      %s74 = sadd.s32 %s73, 1
      %s75 = scalar_select %p72, %s73, %s74
      %p78 = pneg %p72
      %p79 = scmp.eq.s32.totalorder %s11, 1
      %p80 = por %p78, %p79
      %p81 = scmp.ne.s32.totalorder %s73, %s76
      %p82 = scmp.eq.s32.totalorder %s11, 0
      %p83 = por %p81, %p82
      %p84 = scmp.ne.s32.totalorder %s73, %s76
      %p85 = scmp.eq.s32.totalorder %s16, 1
      %p86 = por %p84, %p85
      %p87 = scmp.ne.s32.totalorder %s76, %s77
      %p88 = scmp.eq.s32.totalorder %s16, 0
      %p89 = por %p87, %p88
      %p90 = scmp.ne.s32.totalorder %s76, %s77
      %p91 = scmp.eq.s32.totalorder %s17, 1
      %p92 = por %p90, %p91
      %p94 = scmp.ne.s32.totalorder %s77, %s93
      %p95 = scmp.eq.s32.totalorder %s17, 0
      %p96 = por %p94, %p95
      %p97 = scmp.le.s32.totalorder 1, %s11
      %p98 = scmp.lt.s32.totalorder %s11, 3
      %p99 = pnand %p97, %p98
      %p100 = pneg %p99
      // Predicated region
      $region9: #{tpu_custom_call.1} parent=5 // pred_check
        _
      $region10: #{tpu_custom_call.1} parent=5 // pred_check_branch
        %102 = sbr.rel (%p99) target = $region12
      $region11: #{tpu_custom_call.1} parent=5 // pred_region
        %s103 = ssub.s32 %s11, 1
      $region12: #{tpu_custom_call.1} parent=5 // pred_fallthru
        _
      %p104 = scmp.lt.s32.totalorder %s11, 2
      // Predicated region
      $region13: #{tpu_custom_call.1} parent=5 // pred_check
        %p105 = pneg %p104
      $region14: #{tpu_custom_call.1} parent=5 // pred_check_branch
        %107 = sbr.rel (%p105) target = $region16
      $region15: #{tpu_custom_call.1} parent=5 // pred_region
        // Predicated region
        $region17: #{tpu_custom_call.1} parent=15 // pred_check
          %p108 = pneg %p31
        $region18: #{tpu_custom_call.1} parent=15 // pred_check_branch
          %110 = sbr.rel (%p108) target = $region20
        $region19: #{tpu_custom_call.1} parent=15 // pred_region
          %s111 = smul.u32 8, %s11
          %p112 = scmp.lt.s32.totalorder %s111, 15
          %s113 = scalar_select %p112, %s111, 15
          %s114 = smul.addr %s113, 8
          %s115 = scalar_lea.vmem %s0, %s114
          %s116 = smul.u32 8, %s11
        $region20: #{tpu_custom_call.1} parent=15 // pred_fallthru
          _
        // Predicated region
        $region21: #{tpu_custom_call.1} parent=15 // pred_check
          %p117 = pneg %p57
        $region22: #{tpu_custom_call.1} parent=15 // pred_check_branch
          %119 = sbr.rel (%p117) target = $region24
        $region23: #{tpu_custom_call.1} parent=15 // pred_region
          %s120 = smul.u32 8, %s11
          %p121 = scmp.lt.s32.totalorder %s120, 15
          %s122 = scalar_select %p121, %s120, 15
          %s123 = smul.addr %s122, 2
          %s124 = smul.addr %s123, 8
          %s125 = scalar_lea.vmem %s1, %s124
          %s126 = smul.u32 8, %s11
        $region24: #{tpu_custom_call.1} parent=15 // pred_fallthru
          _
      $region16: #{tpu_custom_call.1} parent=5 // pred_fallthru
        _
      %p127 = scmp.le.s32.totalorder 1, %s11
      %p128 = scmp.lt.s32.totalorder %s11, 3
      %p129 = pnand %p127, %p128
      %p130 = pneg %p129
      // Predicated region
      $region25: #{tpu_custom_call.1} parent=5 // pred_check
        _
      $region26: #{tpu_custom_call.1} parent=5 // pred_check_branch
        %132 = sbr.rel (%p129) target = $region28
      $region27: #{tpu_custom_call.1} parent=5 // pred_region
        %s133 = ssub.s32 %s11, 1
        %s134 = smul.u32 8, %s16
        %p135 = scmp.lt.s32.totalorder %s134, 15
        %s136 = scalar_select %p135, %s134, 15
        %s137 = smul.addr %s136, 8
        %s138 = scalar_lea.vmem %s0, %s137
        %p139 = pneg %p37
        %p140 = pneg %p34
        %s141 = smul.u32 8, %s16
        %p142 = scmp.lt.s32.totalorder %s141, 15
        %s143 = scalar_select %p142, %s141, 15
        %s144 = smul.addr %s143, 2
        %s145 = smul.addr %s144, 8
        %s146 = scalar_lea.vmem %s1, %s145
        %p147 = pneg %p63
        %p148 = pneg %p60
        %p149 = pneg %p89
        %p150 = pneg %p86
        %s151 = sand.u32 %s76, 1
        %s152 = scalar_lea.sflag [#allocation3], %s151
        %s153 = sand.u32 %s76, 1
        %s154 = smul.addr %s153, 8
        %s155 = scalar_lea.vmem [#allocation2], %s154
        %s156 = smul.u32 8, %s16
        %p157 = scmp.lt.s32.totalorder %s156, 15
        %s158 = scalar_select %p157, %s156, 15
        %s159 = smul.addr %s158, 8
        %s160 = scalar_lea.vmem %s0, %s159
        %s161 = smul.u32 8, %s16
        %s162 = smul.u32 8, %s16
        %p163 = scmp.lt.s32.totalorder %s162, 15
        %s164 = scalar_select %p163, %s162, 15
        %s165 = smul.addr %s164, 2
        %s166 = smul.addr %s165, 8
        %s167 = scalar_lea.vmem %s1, %s166
        %s168 = smul.u32 8, %s16
        %v169 = vld [vmem:[%s160] sm:$0xff]
        %v170 = vld [vmem:[%s160 + $0x8] sm:$0xff]
        %v171 = vld [vmem:[%s160 + $0x10] sm:$0xff]
        %v172 = vld [vmem:[%s160 + $0x18] sm:$0xff]
        %v173 = vld [vmem:[%s160 + $0x20] sm:$0xff]
        %v174 = vld [vmem:[%s160 + $0x28] sm:$0xff]
        %v175 = vld [vmem:[%s160 + $0x30] sm:$0xff]
        %v176 = vld [vmem:[%s160 + $0x38] sm:$0xff]
        %v177 = vld [vmem:[%s167] sm:$0xff]
        %v178 = vld [vmem:[%s167 + $0x8] sm:$0xff]
        %v179 = vld [vmem:[%s167 + $0x10] sm:$0xff]
        %v180 = vld [vmem:[%s167 + $0x18] sm:$0xff]
        %v181 = vld [vmem:[%s167 + $0x20] sm:$0xff]
        %v182 = vld [vmem:[%s167 + $0x28] sm:$0xff]
        %v183 = vld [vmem:[%s167 + $0x30] sm:$0xff]
        %v184 = vld [vmem:[%s167 + $0x38] sm:$0xff]
        %v185 = vld [vmem:[%s167 + $0x40] sm:$0xff]
        %v186 = vld [vmem:[%s167 + $0x48] sm:$0xff]
        %v187 = vld [vmem:[%s167 + $0x50] sm:$0xff]
        %v188 = vld [vmem:[%s167 + $0x58] sm:$0xff]
        %v189 = vld [vmem:[%s167 + $0x60] sm:$0xff]
        %v190 = vld [vmem:[%s167 + $0x68] sm:$0xff]
        %v191 = vld [vmem:[%s167 + $0x70] sm:$0xff]
        %v192 = vld [vmem:[%s167 + $0x78] sm:$0xff]
        %v193 = vlaneseq
        %v194 = vshrl.u32 %v193, 7
        %v195 = vlaneseq
        %v196 = vshrl.u32 %v195, 7
        %v197 = vsub.s32 0, %v196
        %v198 = vrot.slane %v169, %v197
        %v199 = vlaneseq
        %v200 = vshrl.u32 %v199, 7
        %v201 = vsub.s32 0, %v200
        %v202 = vrot.slane %v170, %v201
        %v203 = vlaneseq
        %v204 = vshrl.u32 %v203, 7
        %v205 = vsub.s32 0, %v204
        %v206 = vrot.slane %v171, %v205
        %v207 = vlaneseq
        %v208 = vshrl.u32 %v207, 7
        %v209 = vsub.s32 0, %v208
        %v210 = vrot.slane %v172, %v209
        %v211 = vlaneseq
        %v212 = vshrl.u32 %v211, 7
        %v213 = vsub.s32 0, %v212
        %v214 = vrot.slane %v173, %v213
        %v215 = vlaneseq
        %v216 = vshrl.u32 %v215, 7
        %v217 = vsub.s32 0, %v216
        %v218 = vrot.slane %v174, %v217
        %v219 = vlaneseq
        %v220 = vshrl.u32 %v219, 7
        %v221 = vsub.s32 0, %v220
        %v222 = vrot.slane %v175, %v221
        %v223 = vlaneseq
        %v224 = vshrl.u32 %v223, 7
        %v225 = vsub.s32 0, %v224
        %v226 = vrot.slane %v176, %v225
        %vm227 = vcmp.lt.f32.partialorder %v198, %v169
        %vm228 = vcmp.lt.f32.partialorder %v202, %v170
        %vm229 = vcmp.lt.f32.partialorder %v206, %v171
        %vm230 = vcmp.lt.f32.partialorder %v210, %v172
        %vm231 = vcmp.lt.f32.partialorder %v214, %v173
        %vm232 = vcmp.lt.f32.partialorder %v218, %v174
        %vm233 = vcmp.lt.f32.partialorder %v222, %v175
        %vm234 = vcmp.lt.f32.partialorder %v226, %v176
        %vm235 = vcmp.eq.f32.partialorder %v198, %v169
        %vm236 = vcmp.eq.f32.partialorder %v202, %v170
        %vm237 = vcmp.eq.f32.partialorder %v206, %v171
        %vm238 = vcmp.eq.f32.partialorder %v210, %v172
        %vm239 = vcmp.eq.f32.partialorder %v214, %v173
        %vm240 = vcmp.eq.f32.partialorder %v218, %v174
        %vm241 = vcmp.eq.f32.partialorder %v222, %v175
        %vm242 = vcmp.eq.f32.partialorder %v226, %v176
        %vm243 = vcmp.gt.s32.totalorder %v194, 0
        %vm244 = vmand %vm235, %vm243
        %vm245 = vmand %vm236, %vm243
        %vm246 = vmand %vm237, %vm243
        %vm247 = vmand %vm238, %vm243
        %vm248 = vmand %vm239, %vm243
        %vm249 = vmand %vm240, %vm243
        %vm250 = vmand %vm241, %vm243
        %vm251 = vmand %vm242, %vm243
        %vm252 = vmor %vm227, %vm244
        %vm253 = vmor %vm228, %vm245
        %vm254 = vmor %vm229, %vm246
        %vm255 = vmor %vm230, %vm247
        %vm256 = vmor %vm231, %vm248
        %vm257 = vmor %vm232, %vm249
        %vm258 = vmor %vm233, %vm250
        %vm259 = vmor %vm234, %vm251
        %v260 = vsel %vm252, 1, 0
        %v261 = vsel %vm253, 1, 0
        %v262 = vsel %vm254, 1, 0
        %v263 = vsel %vm255, 1, 0
        %v264 = vsel %vm256, 1, 0
        %v265 = vsel %vm257, 1, 0
        %v266 = vsel %vm258, 1, 0
        %v267 = vsel %vm259, 1, 0
        %v268 = vlaneseq
        %v269 = vshrl.u32 %v268, 7
        %v270 = vsub.s32 1, %v269
        %v271 = vrot.slane %v169, %v270
        %v272 = vlaneseq
        %v273 = vshrl.u32 %v272, 7
        %v274 = vsub.s32 1, %v273
        %v275 = vrot.slane %v170, %v274
        %v276 = vlaneseq
        %v277 = vshrl.u32 %v276, 7
        %v278 = vsub.s32 1, %v277
        %v279 = vrot.slane %v171, %v278
        %v280 = vlaneseq
        %v281 = vshrl.u32 %v280, 7
        %v282 = vsub.s32 1, %v281
        %v283 = vrot.slane %v172, %v282
        %v284 = vlaneseq
        %v285 = vshrl.u32 %v284, 7
        %v286 = vsub.s32 1, %v285
        %v287 = vrot.slane %v173, %v286
        %v288 = vlaneseq
        %v289 = vshrl.u32 %v288, 7
        %v290 = vsub.s32 1, %v289
        %v291 = vrot.slane %v174, %v290
        %v292 = vlaneseq
        %v293 = vshrl.u32 %v292, 7
        %v294 = vsub.s32 1, %v293
        %v295 = vrot.slane %v175, %v294
        %v296 = vlaneseq
        %v297 = vshrl.u32 %v296, 7
        %v298 = vsub.s32 1, %v297
        %v299 = vrot.slane %v176, %v298
        %vm300 = vcmp.lt.f32.partialorder %v271, %v169
        %vm301 = vcmp.lt.f32.partialorder %v275, %v170
        %vm302 = vcmp.lt.f32.partialorder %v279, %v171
        %vm303 = vcmp.lt.f32.partialorder %v283, %v172
        %vm304 = vcmp.lt.f32.partialorder %v287, %v173
        %vm305 = vcmp.lt.f32.partialorder %v291, %v174
        %vm306 = vcmp.lt.f32.partialorder %v295, %v175
        %vm307 = vcmp.lt.f32.partialorder %v299, %v176
        %vm308 = vcmp.eq.f32.partialorder %v271, %v169
        %vm309 = vcmp.eq.f32.partialorder %v275, %v170
        %vm310 = vcmp.eq.f32.partialorder %v279, %v171
        %vm311 = vcmp.eq.f32.partialorder %v283, %v172
        %vm312 = vcmp.eq.f32.partialorder %v287, %v173
        %vm313 = vcmp.eq.f32.partialorder %v291, %v174
        %vm314 = vcmp.eq.f32.partialorder %v295, %v175
        %vm315 = vcmp.eq.f32.partialorder %v299, %v176
        %vm316 = vcmp.gt.s32.totalorder %v194, 1
        %vm317 = vmand %vm308, %vm316
        %vm318 = vmand %vm309, %vm316
        %vm319 = vmand %vm310, %vm316
        %vm320 = vmand %vm311, %vm316
        %vm321 = vmand %vm312, %vm316
        %vm322 = vmand %vm313, %vm316
        %vm323 = vmand %vm314, %vm316
        %vm324 = vmand %vm315, %vm316
        %vm325 = vmor %vm300, %vm317
        %vm326 = vmor %vm301, %vm318
        %vm327 = vmor %vm302, %vm319
        %vm328 = vmor %vm303, %vm320
        %vm329 = vmor %vm304, %vm321
        %vm330 = vmor %vm305, %vm322
        %vm331 = vmor %vm306, %vm323
        %vm332 = vmor %vm307, %vm324
        %v333 = vsel %vm325, 1, 0
        %v334 = vsel %vm326, 1, 0
        %v335 = vsel %vm327, 1, 0
        %v336 = vsel %vm328, 1, 0
        %v337 = vsel %vm329, 1, 0
        %v338 = vsel %vm330, 1, 0
        %v339 = vsel %vm331, 1, 0
        %v340 = vsel %vm332, 1, 0
        %v341 = vadd.s32 %v260, %v333
        %v342 = vadd.s32 %v261, %v334
        %v343 = vadd.s32 %v262, %v335
        %v344 = vadd.s32 %v263, %v336
        %v345 = vadd.s32 %v264, %v337
        %v346 = vadd.s32 %v265, %v338
        %v347 = vadd.s32 %v266, %v339
        %v348 = vadd.s32 %v267, %v340
        %v349 = vlaneseq
        %v350 = vshrl.u32 %v349, 7
        %v351 = vsub.s32 2, %v350
        %v352 = vrot.slane %v169, %v351
        %v353 = vlaneseq
        %v354 = vshrl.u32 %v353, 7
        %v355 = vsub.s32 2, %v354
        %v356 = vrot.slane %v170, %v355
        %v357 = vlaneseq
        %v358 = vshrl.u32 %v357, 7
        %v359 = vsub.s32 2, %v358
        %v360 = vrot.slane %v171, %v359
        %v361 = vlaneseq
        %v362 = vshrl.u32 %v361, 7
        %v363 = vsub.s32 2, %v362
        %v364 = vrot.slane %v172, %v363
        %v365 = vlaneseq
        %v366 = vshrl.u32 %v365, 7
        %v367 = vsub.s32 2, %v366
        %v368 = vrot.slane %v173, %v367
        %v369 = vlaneseq
        %v370 = vshrl.u32 %v369, 7
        %v371 = vsub.s32 2, %v370
        %v372 = vrot.slane %v174, %v371
        %v373 = vlaneseq
        %v374 = vshrl.u32 %v373, 7
        %v375 = vsub.s32 2, %v374
        %v376 = vrot.slane %v175, %v375
        %v377 = vlaneseq
        %v378 = vshrl.u32 %v377, 7
        %v379 = vsub.s32 2, %v378
        %v380 = vrot.slane %v176, %v379
        %vm381 = vcmp.lt.f32.partialorder %v352, %v169
        %vm382 = vcmp.lt.f32.partialorder %v356, %v170
        %vm383 = vcmp.lt.f32.partialorder %v360, %v171
        %vm384 = vcmp.lt.f32.partialorder %v364, %v172
        %vm385 = vcmp.lt.f32.partialorder %v368, %v173
        %vm386 = vcmp.lt.f32.partialorder %v372, %v174
        %vm387 = vcmp.lt.f32.partialorder %v376, %v175
        %vm388 = vcmp.lt.f32.partialorder %v380, %v176
        %vm389 = vcmp.eq.f32.partialorder %v352, %v169
        %vm390 = vcmp.eq.f32.partialorder %v356, %v170
        %vm391 = vcmp.eq.f32.partialorder %v360, %v171
        %vm392 = vcmp.eq.f32.partialorder %v364, %v172
        %vm393 = vcmp.eq.f32.partialorder %v368, %v173
        %vm394 = vcmp.eq.f32.partialorder %v372, %v174
        %vm395 = vcmp.eq.f32.partialorder %v376, %v175
        %vm396 = vcmp.eq.f32.partialorder %v380, %v176
        %vm397 = vcmp.gt.s32.totalorder %v194, 2
        %vm398 = vmand %vm389, %vm397
        %vm399 = vmand %vm390, %vm397
        %vm400 = vmand %vm391, %vm397
        %vm401 = vmand %vm392, %vm397
        %vm402 = vmand %vm393, %vm397
        %vm403 = vmand %vm394, %vm397
        %vm404 = vmand %vm395, %vm397
        %vm405 = vmand %vm396, %vm397
        %vm406 = vmor %vm381, %vm398
        %vm407 = vmor %vm382, %vm399
        %vm408 = vmor %vm383, %vm400
        %vm409 = vmor %vm384, %vm401
        %vm410 = vmor %vm385, %vm402
        %vm411 = vmor %vm386, %vm403
        %vm412 = vmor %vm387, %vm404
        %vm413 = vmor %vm388, %vm405
        %v414 = vsel %vm406, 1, 0
        %v415 = vsel %vm407, 1, 0
        %v416 = vsel %vm408, 1, 0
        %v417 = vsel %vm409, 1, 0
        %v418 = vsel %vm410, 1, 0
        %v419 = vsel %vm411, 1, 0
        %v420 = vsel %vm412, 1, 0
        %v421 = vsel %vm413, 1, 0
        %v422 = vadd.s32 %v341, %v414
        %v423 = vadd.s32 %v342, %v415
        %v424 = vadd.s32 %v343, %v416
        %v425 = vadd.s32 %v344, %v417
        %v426 = vadd.s32 %v345, %v418
        %v427 = vadd.s32 %v346, %v419
        %v428 = vadd.s32 %v347, %v420
        %v429 = vadd.s32 %v348, %v421
        %v430 = vlaneseq
        %v431 = vshrl.u32 %v430, 7
        %v432 = vsub.s32 3, %v431
        %v433 = vrot.slane %v169, %v432
        %v434 = vlaneseq
        %v435 = vshrl.u32 %v434, 7
        %v436 = vsub.s32 3, %v435
        %v437 = vrot.slane %v170, %v436
        %v438 = vlaneseq
        %v439 = vshrl.u32 %v438, 7
        %v440 = vsub.s32 3, %v439
        %v441 = vrot.slane %v171, %v440
        %v442 = vlaneseq
        %v443 = vshrl.u32 %v442, 7
        %v444 = vsub.s32 3, %v443
        %v445 = vrot.slane %v172, %v444
        %v446 = vlaneseq
        %v447 = vshrl.u32 %v446, 7
        %v448 = vsub.s32 3, %v447
        %v449 = vrot.slane %v173, %v448
        %v450 = vlaneseq
        %v451 = vshrl.u32 %v450, 7
        %v452 = vsub.s32 3, %v451
        %v453 = vrot.slane %v174, %v452
        %v454 = vlaneseq
        %v455 = vshrl.u32 %v454, 7
        %v456 = vsub.s32 3, %v455
        %v457 = vrot.slane %v175, %v456
        %v458 = vlaneseq
        %v459 = vshrl.u32 %v458, 7
        %v460 = vsub.s32 3, %v459
        %v461 = vrot.slane %v176, %v460
        %vm462 = vcmp.lt.f32.partialorder %v433, %v169
        %vm463 = vcmp.lt.f32.partialorder %v437, %v170
        %vm464 = vcmp.lt.f32.partialorder %v441, %v171
        %vm465 = vcmp.lt.f32.partialorder %v445, %v172
        %vm466 = vcmp.lt.f32.partialorder %v449, %v173
        %vm467 = vcmp.lt.f32.partialorder %v453, %v174
        %vm468 = vcmp.lt.f32.partialorder %v457, %v175
        %vm469 = vcmp.lt.f32.partialorder %v461, %v176
        %vm470 = vcmp.eq.f32.partialorder %v433, %v169
        %vm471 = vcmp.eq.f32.partialorder %v437, %v170
        %vm472 = vcmp.eq.f32.partialorder %v441, %v171
        %vm473 = vcmp.eq.f32.partialorder %v445, %v172
        %vm474 = vcmp.eq.f32.partialorder %v449, %v173
        %vm475 = vcmp.eq.f32.partialorder %v453, %v174
        %vm476 = vcmp.eq.f32.partialorder %v457, %v175
        %vm477 = vcmp.eq.f32.partialorder %v461, %v176
        %vm478 = vcmp.gt.s32.totalorder %v194, 3
        %vm479 = vmand %vm470, %vm478
        %vm480 = vmand %vm471, %vm478
        %vm481 = vmand %vm472, %vm478
        %vm482 = vmand %vm473, %vm478
        %vm483 = vmand %vm474, %vm478
        %vm484 = vmand %vm475, %vm478
        %vm485 = vmand %vm476, %vm478
        %vm486 = vmand %vm477, %vm478
        %vm487 = vmor %vm462, %vm479
        %vm488 = vmor %vm463, %vm480
        %vm489 = vmor %vm464, %vm481
        %vm490 = vmor %vm465, %vm482
        %vm491 = vmor %vm466, %vm483
        %vm492 = vmor %vm467, %vm484
        %vm493 = vmor %vm468, %vm485
        %vm494 = vmor %vm469, %vm486
        %v495 = vsel %vm487, 1, 0
        %v496 = vsel %vm488, 1, 0
        %v497 = vsel %vm489, 1, 0
        %v498 = vsel %vm490, 1, 0
        %v499 = vsel %vm491, 1, 0
        %v500 = vsel %vm492, 1, 0
        %v501 = vsel %vm493, 1, 0
        %v502 = vsel %vm494, 1, 0
        %v503 = vadd.s32 %v422, %v495
        %v504 = vadd.s32 %v423, %v496
        %v505 = vadd.s32 %v424, %v497
        %v506 = vadd.s32 %v425, %v498
        %v507 = vadd.s32 %v426, %v499
        %v508 = vadd.s32 %v427, %v500
        %v509 = vadd.s32 %v428, %v501
        %v510 = vadd.s32 %v429, %v502
        %v511 = vlaneseq
        %v512 = vshrl.u32 %v511, 7
        %v513 = vsub.s32 4, %v512
        %v514 = vrot.slane %v169, %v513
        %v515 = vlaneseq
        %v516 = vshrl.u32 %v515, 7
        %v517 = vsub.s32 4, %v516
        %v518 = vrot.slane %v170, %v517
        %v519 = vlaneseq
        %v520 = vshrl.u32 %v519, 7
        %v521 = vsub.s32 4, %v520
        %v522 = vrot.slane %v171, %v521
        %v523 = vlaneseq
        %v524 = vshrl.u32 %v523, 7
        %v525 = vsub.s32 4, %v524
        %v526 = vrot.slane %v172, %v525
        %v527 = vlaneseq
        %v528 = vshrl.u32 %v527, 7
        %v529 = vsub.s32 4, %v528
        %v530 = vrot.slane %v173, %v529
        %v531 = vlaneseq
        %v532 = vshrl.u32 %v531, 7
        %v533 = vsub.s32 4, %v532
        %v534 = vrot.slane %v174, %v533
        %v535 = vlaneseq
        %v536 = vshrl.u32 %v535, 7
        %v537 = vsub.s32 4, %v536
        %v538 = vrot.slane %v175, %v537
        %v539 = vlaneseq
        %v540 = vshrl.u32 %v539, 7
        %v541 = vsub.s32 4, %v540
        %v542 = vrot.slane %v176, %v541
        %vm543 = vcmp.lt.f32.partialorder %v514, %v169
        %vm544 = vcmp.lt.f32.partialorder %v518, %v170
        %vm545 = vcmp.lt.f32.partialorder %v522, %v171
        %vm546 = vcmp.lt.f32.partialorder %v526, %v172
        %vm547 = vcmp.lt.f32.partialorder %v530, %v173
        %vm548 = vcmp.lt.f32.partialorder %v534, %v174
        %vm549 = vcmp.lt.f32.partialorder %v538, %v175
        %vm550 = vcmp.lt.f32.partialorder %v542, %v176
        %vm551 = vcmp.eq.f32.partialorder %v514, %v169
        %vm552 = vcmp.eq.f32.partialorder %v518, %v170
        %vm553 = vcmp.eq.f32.partialorder %v522, %v171
        %vm554 = vcmp.eq.f32.partialorder %v526, %v172
        %vm555 = vcmp.eq.f32.partialorder %v530, %v173
        %vm556 = vcmp.eq.f32.partialorder %v534, %v174
        %vm557 = vcmp.eq.f32.partialorder %v538, %v175
        %vm558 = vcmp.eq.f32.partialorder %v542, %v176
        %vm559 = vcmp.gt.s32.totalorder %v194, 4
        %vm560 = vmand %vm551, %vm559
        %vm561 = vmand %vm552, %vm559
        %vm562 = vmand %vm553, %vm559
        %vm563 = vmand %vm554, %vm559
        %vm564 = vmand %vm555, %vm559
        %vm565 = vmand %vm556, %vm559
        %vm566 = vmand %vm557, %vm559
        %vm567 = vmand %vm558, %vm559
        %vm568 = vmor %vm543, %vm560
        %vm569 = vmor %vm544, %vm561
        %vm570 = vmor %vm545, %vm562
        %vm571 = vmor %vm546, %vm563
        %vm572 = vmor %vm547, %vm564
        %vm573 = vmor %vm548, %vm565
        %vm574 = vmor %vm549, %vm566
        %vm575 = vmor %vm550, %vm567
        %v576 = vsel %vm568, 1, 0
        %v577 = vsel %vm569, 1, 0
        %v578 = vsel %vm570, 1, 0
        %v579 = vsel %vm571, 1, 0
        %v580 = vsel %vm572, 1, 0
        %v581 = vsel %vm573, 1, 0
        %v582 = vsel %vm574, 1, 0
        %v583 = vsel %vm575, 1, 0
        %v584 = vadd.s32 %v503, %v576
        %v585 = vadd.s32 %v504, %v577
        %v586 = vadd.s32 %v505, %v578
        %v587 = vadd.s32 %v506, %v579
        %v588 = vadd.s32 %v507, %v580
        %v589 = vadd.s32 %v508, %v581
        %v590 = vadd.s32 %v509, %v582
        %v591 = vadd.s32 %v510, %v583
        %v592 = vlaneseq
        %v593 = vshrl.u32 %v592, 7
        %v594 = vsub.s32 5, %v593
        %v595 = vrot.slane %v169, %v594
        %v596 = vlaneseq
        %v597 = vshrl.u32 %v596, 7
        %v598 = vsub.s32 5, %v597
        %v599 = vrot.slane %v170, %v598
        %v600 = vlaneseq
        %v601 = vshrl.u32 %v600, 7
        %v602 = vsub.s32 5, %v601
        %v603 = vrot.slane %v171, %v602
        %v604 = vlaneseq
        %v605 = vshrl.u32 %v604, 7
        %v606 = vsub.s32 5, %v605
        %v607 = vrot.slane %v172, %v606
        %v608 = vlaneseq
        %v609 = vshrl.u32 %v608, 7
        %v610 = vsub.s32 5, %v609
        %v611 = vrot.slane %v173, %v610
        %v612 = vlaneseq
        %v613 = vshrl.u32 %v612, 7
        %v614 = vsub.s32 5, %v613
        %v615 = vrot.slane %v174, %v614
        %v616 = vlaneseq
        %v617 = vshrl.u32 %v616, 7
        %v618 = vsub.s32 5, %v617
        %v619 = vrot.slane %v175, %v618
        %v620 = vlaneseq
        %v621 = vshrl.u32 %v620, 7
        %v622 = vsub.s32 5, %v621
        %v623 = vrot.slane %v176, %v622
        %vm624 = vcmp.lt.f32.partialorder %v595, %v169
        %vm625 = vcmp.lt.f32.partialorder %v599, %v170
        %vm626 = vcmp.lt.f32.partialorder %v603, %v171
        %vm627 = vcmp.lt.f32.partialorder %v607, %v172
        %vm628 = vcmp.lt.f32.partialorder %v611, %v173
        %vm629 = vcmp.lt.f32.partialorder %v615, %v174
        %vm630 = vcmp.lt.f32.partialorder %v619, %v175
        %vm631 = vcmp.lt.f32.partialorder %v623, %v176
        %vm632 = vcmp.eq.f32.partialorder %v595, %v169
        %vm633 = vcmp.eq.f32.partialorder %v599, %v170
        %vm634 = vcmp.eq.f32.partialorder %v603, %v171
        %vm635 = vcmp.eq.f32.partialorder %v607, %v172
        %vm636 = vcmp.eq.f32.partialorder %v611, %v173
        %vm637 = vcmp.eq.f32.partialorder %v615, %v174
        %vm638 = vcmp.eq.f32.partialorder %v619, %v175
        %vm639 = vcmp.eq.f32.partialorder %v623, %v176
        %vm640 = vcmp.gt.s32.totalorder %v194, 5
        %vm641 = vmand %vm632, %vm640
        %vm642 = vmand %vm633, %vm640
        %vm643 = vmand %vm634, %vm640
        %vm644 = vmand %vm635, %vm640
        %vm645 = vmand %vm636, %vm640
        %vm646 = vmand %vm637, %vm640
        %vm647 = vmand %vm638, %vm640
        %vm648 = vmand %vm639, %vm640
        %vm649 = vmor %vm624, %vm641
        %vm650 = vmor %vm625, %vm642
        %vm651 = vmor %vm626, %vm643
        %vm652 = vmor %vm627, %vm644
        %vm653 = vmor %vm628, %vm645
        %vm654 = vmor %vm629, %vm646
        %vm655 = vmor %vm630, %vm647
        %vm656 = vmor %vm631, %vm648
        %v657 = vsel %vm649, 1, 0
        %v658 = vsel %vm650, 1, 0
        %v659 = vsel %vm651, 1, 0
        %v660 = vsel %vm652, 1, 0
        %v661 = vsel %vm653, 1, 0
        %v662 = vsel %vm654, 1, 0
        %v663 = vsel %vm655, 1, 0
        %v664 = vsel %vm656, 1, 0
        %v665 = vadd.s32 %v584, %v657
        %v666 = vadd.s32 %v585, %v658
        %v667 = vadd.s32 %v586, %v659
        %v668 = vadd.s32 %v587, %v660
        %v669 = vadd.s32 %v588, %v661
        %v670 = vadd.s32 %v589, %v662
        %v671 = vadd.s32 %v590, %v663
        %v672 = vadd.s32 %v591, %v664
        %v673 = vlaneseq
        %v674 = vshrl.u32 %v673, 7
        %v675 = vsub.s32 6, %v674
        %v676 = vrot.slane %v169, %v675
        %v677 = vlaneseq
        %v678 = vshrl.u32 %v677, 7
        %v679 = vsub.s32 6, %v678
        %v680 = vrot.slane %v170, %v679
        %v681 = vlaneseq
        %v682 = vshrl.u32 %v681, 7
        %v683 = vsub.s32 6, %v682
        %v684 = vrot.slane %v171, %v683
        %v685 = vlaneseq
        %v686 = vshrl.u32 %v685, 7
        %v687 = vsub.s32 6, %v686
        %v688 = vrot.slane %v172, %v687
        %v689 = vlaneseq
        %v690 = vshrl.u32 %v689, 7
        %v691 = vsub.s32 6, %v690
        %v692 = vrot.slane %v173, %v691
        %v693 = vlaneseq
        %v694 = vshrl.u32 %v693, 7
        %v695 = vsub.s32 6, %v694
        %v696 = vrot.slane %v174, %v695
        %v697 = vlaneseq
        %v698 = vshrl.u32 %v697, 7
        %v699 = vsub.s32 6, %v698
        %v700 = vrot.slane %v175, %v699
        %v701 = vlaneseq
        %v702 = vshrl.u32 %v701, 7
        %v703 = vsub.s32 6, %v702
        %v704 = vrot.slane %v176, %v703
        %vm705 = vcmp.lt.f32.partialorder %v676, %v169
        %vm706 = vcmp.lt.f32.partialorder %v680, %v170
        %vm707 = vcmp.lt.f32.partialorder %v684, %v171
        %vm708 = vcmp.lt.f32.partialorder %v688, %v172
        %vm709 = vcmp.lt.f32.partialorder %v692, %v173
        %vm710 = vcmp.lt.f32.partialorder %v696, %v174
        %vm711 = vcmp.lt.f32.partialorder %v700, %v175
        %vm712 = vcmp.lt.f32.partialorder %v704, %v176
        %vm713 = vcmp.eq.f32.partialorder %v676, %v169
        %vm714 = vcmp.eq.f32.partialorder %v680, %v170
        %vm715 = vcmp.eq.f32.partialorder %v684, %v171
        %vm716 = vcmp.eq.f32.partialorder %v688, %v172
        %vm717 = vcmp.eq.f32.partialorder %v692, %v173
        %vm718 = vcmp.eq.f32.partialorder %v696, %v174
        %vm719 = vcmp.eq.f32.partialorder %v700, %v175
        %vm720 = vcmp.eq.f32.partialorder %v704, %v176
        %vm721 = vcmp.gt.s32.totalorder %v194, 6
        %vm722 = vmand %vm713, %vm721
        %vm723 = vmand %vm714, %vm721
        %vm724 = vmand %vm715, %vm721
        %vm725 = vmand %vm716, %vm721
        %vm726 = vmand %vm717, %vm721
        %vm727 = vmand %vm718, %vm721
        %vm728 = vmand %vm719, %vm721
        %vm729 = vmand %vm720, %vm721
        %vm730 = vmor %vm705, %vm722
        %vm731 = vmor %vm706, %vm723
        %vm732 = vmor %vm707, %vm724
        %vm733 = vmor %vm708, %vm725
        %vm734 = vmor %vm709, %vm726
        %vm735 = vmor %vm710, %vm727
        %vm736 = vmor %vm711, %vm728
        %vm737 = vmor %vm712, %vm729
        %v738 = vsel %vm730, 1, 0
        %v739 = vsel %vm731, 1, 0
        %v740 = vsel %vm732, 1, 0
        %v741 = vsel %vm733, 1, 0
        %v742 = vsel %vm734, 1, 0
        %v743 = vsel %vm735, 1, 0
        %v744 = vsel %vm736, 1, 0
        %v745 = vsel %vm737, 1, 0
        %v746 = vadd.s32 %v665, %v738
        %v747 = vadd.s32 %v666, %v739
        %v748 = vadd.s32 %v667, %v740
        %v749 = vadd.s32 %v668, %v741
        %v750 = vadd.s32 %v669, %v742
        %v751 = vadd.s32 %v670, %v743
        %v752 = vadd.s32 %v671, %v744
        %v753 = vadd.s32 %v672, %v745
        %v754 = vlaneseq
        %v755 = vshrl.u32 %v754, 7
        %v756 = vsub.s32 7, %v755
        %v757 = vrot.slane %v169, %v756
        %v758 = vlaneseq
        %v759 = vshrl.u32 %v758, 7
        %v760 = vsub.s32 7, %v759
        %v761 = vrot.slane %v170, %v760
        %v762 = vlaneseq
        %v763 = vshrl.u32 %v762, 7
        %v764 = vsub.s32 7, %v763
        %v765 = vrot.slane %v171, %v764
        %v766 = vlaneseq
        %v767 = vshrl.u32 %v766, 7
        %v768 = vsub.s32 7, %v767
        %v769 = vrot.slane %v172, %v768
        %v770 = vlaneseq
        %v771 = vshrl.u32 %v770, 7
        %v772 = vsub.s32 7, %v771
        %v773 = vrot.slane %v173, %v772
        %v774 = vlaneseq
        %v775 = vshrl.u32 %v774, 7
        %v776 = vsub.s32 7, %v775
        %v777 = vrot.slane %v174, %v776
        %v778 = vlaneseq
        %v779 = vshrl.u32 %v778, 7
        %v780 = vsub.s32 7, %v779
        %v781 = vrot.slane %v175, %v780
        %v782 = vlaneseq
        %v783 = vshrl.u32 %v782, 7
        %v784 = vsub.s32 7, %v783
        %v785 = vrot.slane %v176, %v784
        %vm786 = vcmp.lt.f32.partialorder %v757, %v169
        %vm787 = vcmp.lt.f32.partialorder %v761, %v170
        %vm788 = vcmp.lt.f32.partialorder %v765, %v171
        %vm789 = vcmp.lt.f32.partialorder %v769, %v172
        %vm790 = vcmp.lt.f32.partialorder %v773, %v173
        %vm791 = vcmp.lt.f32.partialorder %v777, %v174
        %vm792 = vcmp.lt.f32.partialorder %v781, %v175
        %vm793 = vcmp.lt.f32.partialorder %v785, %v176
        %vm794 = vcmp.eq.f32.partialorder %v757, %v169
        %vm795 = vcmp.eq.f32.partialorder %v761, %v170
        %vm796 = vcmp.eq.f32.partialorder %v765, %v171
        %vm797 = vcmp.eq.f32.partialorder %v769, %v172
        %vm798 = vcmp.eq.f32.partialorder %v773, %v173
        %vm799 = vcmp.eq.f32.partialorder %v777, %v174
        %vm800 = vcmp.eq.f32.partialorder %v781, %v175
        %vm801 = vcmp.eq.f32.partialorder %v785, %v176
        %vm802 = vcmp.gt.s32.totalorder %v194, 7
        %vm803 = vmand %vm794, %vm802
        %vm804 = vmand %vm795, %vm802
        %vm805 = vmand %vm796, %vm802
        %vm806 = vmand %vm797, %vm802
        %vm807 = vmand %vm798, %vm802
        %vm808 = vmand %vm799, %vm802
        %vm809 = vmand %vm800, %vm802
        %vm810 = vmand %vm801, %vm802
        %vm811 = vmor %vm786, %vm803
        %vm812 = vmor %vm787, %vm804
        %vm813 = vmor %vm788, %vm805
        %vm814 = vmor %vm789, %vm806
        %vm815 = vmor %vm790, %vm807
        %vm816 = vmor %vm791, %vm808
        %vm817 = vmor %vm792, %vm809
        %vm818 = vmor %vm793, %vm810
        %v819 = vsel %vm811, 1, 0
        %v820 = vsel %vm812, 1, 0
        %v821 = vsel %vm813, 1, 0
        %v822 = vsel %vm814, 1, 0
        %v823 = vsel %vm815, 1, 0
        %v824 = vsel %vm816, 1, 0
        %v825 = vsel %vm817, 1, 0
        %v826 = vsel %vm818, 1, 0
        %v827 = vadd.s32 %v746, %v819
        %v828 = vadd.s32 %v747, %v820
        %v829 = vadd.s32 %v748, %v821
        %v830 = vadd.s32 %v749, %v822
        %v831 = vadd.s32 %v750, %v823
        %v832 = vadd.s32 %v751, %v824
        %v833 = vadd.s32 %v752, %v825
        %v834 = vadd.s32 %v753, %v826
        %v835 = vlaneseq
        %v836 = vshrl.u32 %v835, 7
        %v837 = vsub.s32 0, %v836
        %v838 = vrot.slane %v827, %v837
        %v839 = vlaneseq
        %v840 = vshrl.u32 %v839, 7
        %v841 = vsub.s32 0, %v840
        %v842 = vrot.slane %v828, %v841
        %v843 = vlaneseq
        %v844 = vshrl.u32 %v843, 7
        %v845 = vsub.s32 0, %v844
        %v846 = vrot.slane %v829, %v845
        %v847 = vlaneseq
        %v848 = vshrl.u32 %v847, 7
        %v849 = vsub.s32 0, %v848
        %v850 = vrot.slane %v830, %v849
        %v851 = vlaneseq
        %v852 = vshrl.u32 %v851, 7
        %v853 = vsub.s32 0, %v852
        %v854 = vrot.slane %v831, %v853
        %v855 = vlaneseq
        %v856 = vshrl.u32 %v855, 7
        %v857 = vsub.s32 0, %v856
        %v858 = vrot.slane %v832, %v857
        %v859 = vlaneseq
        %v860 = vshrl.u32 %v859, 7
        %v861 = vsub.s32 0, %v860
        %v862 = vrot.slane %v833, %v861
        %v863 = vlaneseq
        %v864 = vshrl.u32 %v863, 7
        %v865 = vsub.s32 0, %v864
        %v866 = vrot.slane %v834, %v865
        %vm867 = vcmp.eq.s32.totalorder %v194, %v838
        %vm868 = vcmp.eq.s32.totalorder %v194, %v842
        %vm869 = vcmp.eq.s32.totalorder %v194, %v846
        %vm870 = vcmp.eq.s32.totalorder %v194, %v850
        %vm871 = vcmp.eq.s32.totalorder %v194, %v854
        %vm872 = vcmp.eq.s32.totalorder %v194, %v858
        %vm873 = vcmp.eq.s32.totalorder %v194, %v862
        %vm874 = vcmp.eq.s32.totalorder %v194, %v866
        %v875 = vsel %vm867, %v198, 0.0
        %v876 = vsel %vm868, %v202, 0.0
        %v877 = vsel %vm869, %v206, 0.0
        %v878 = vsel %vm870, %v210, 0.0
        %v879 = vsel %vm871, %v214, 0.0
        %v880 = vsel %vm872, %v218, 0.0
        %v881 = vsel %vm873, %v222, 0.0
        %v882 = vsel %vm874, %v226, 0.0
        %v883 = vadd.f32 %v875, 0.0
        %v884 = vadd.f32 %v876, 0.0
        %v885 = vadd.f32 %v877, 0.0
        %v886 = vadd.f32 %v878, 0.0
        %v887 = vadd.f32 %v879, 0.0
        %v888 = vadd.f32 %v880, 0.0
        %v889 = vadd.f32 %v881, 0.0
        %v890 = vadd.f32 %v882, 0.0
        %v891 = vlaneseq
        %v892 = vshrl.u32 %v891, 7
        %v893 = vsub.s32 1, %v892
        %v894 = vrot.slane %v827, %v893
        %v895 = vlaneseq
        %v896 = vshrl.u32 %v895, 7
        %v897 = vsub.s32 1, %v896
        %v898 = vrot.slane %v828, %v897
        %v899 = vlaneseq
        %v900 = vshrl.u32 %v899, 7
        %v901 = vsub.s32 1, %v900
        %v902 = vrot.slane %v829, %v901
        %v903 = vlaneseq
        %v904 = vshrl.u32 %v903, 7
        %v905 = vsub.s32 1, %v904
        %v906 = vrot.slane %v830, %v905
        %v907 = vlaneseq
        %v908 = vshrl.u32 %v907, 7
        %v909 = vsub.s32 1, %v908
        %v910 = vrot.slane %v831, %v909
        %v911 = vlaneseq
        %v912 = vshrl.u32 %v911, 7
        %v913 = vsub.s32 1, %v912
        %v914 = vrot.slane %v832, %v913
        %v915 = vlaneseq
        %v916 = vshrl.u32 %v915, 7
        %v917 = vsub.s32 1, %v916
        %v918 = vrot.slane %v833, %v917
        %v919 = vlaneseq
        %v920 = vshrl.u32 %v919, 7
        %v921 = vsub.s32 1, %v920
        %v922 = vrot.slane %v834, %v921
        %vm923 = vcmp.eq.s32.totalorder %v194, %v894
        %vm924 = vcmp.eq.s32.totalorder %v194, %v898
        %vm925 = vcmp.eq.s32.totalorder %v194, %v902
        %vm926 = vcmp.eq.s32.totalorder %v194, %v906
        %vm927 = vcmp.eq.s32.totalorder %v194, %v910
        %vm928 = vcmp.eq.s32.totalorder %v194, %v914
        %vm929 = vcmp.eq.s32.totalorder %v194, %v918
        %vm930 = vcmp.eq.s32.totalorder %v194, %v922
        %v931 = vsel %vm923, %v271, 0.0
        %v932 = vsel %vm924, %v275, 0.0
        %v933 = vsel %vm925, %v279, 0.0
        %v934 = vsel %vm926, %v283, 0.0
        %v935 = vsel %vm927, %v287, 0.0
        %v936 = vsel %vm928, %v291, 0.0
        %v937 = vsel %vm929, %v295, 0.0
        %v938 = vsel %vm930, %v299, 0.0
        %v939 = vadd.f32 %v883, %v931
        %v940 = vadd.f32 %v884, %v932
        %v941 = vadd.f32 %v885, %v933
        %v942 = vadd.f32 %v886, %v934
        %v943 = vadd.f32 %v887, %v935
        %v944 = vadd.f32 %v888, %v936
        %v945 = vadd.f32 %v889, %v937
        %v946 = vadd.f32 %v890, %v938
        %v947 = vlaneseq
        %v948 = vshrl.u32 %v947, 7
        %v949 = vsub.s32 2, %v948
        %v950 = vrot.slane %v827, %v949
        %v951 = vlaneseq
        %v952 = vshrl.u32 %v951, 7
        %v953 = vsub.s32 2, %v952
        %v954 = vrot.slane %v828, %v953
        %v955 = vlaneseq
        %v956 = vshrl.u32 %v955, 7
        %v957 = vsub.s32 2, %v956
        %v958 = vrot.slane %v829, %v957
        %v959 = vlaneseq
        %v960 = vshrl.u32 %v959, 7
        %v961 = vsub.s32 2, %v960
        %v962 = vrot.slane %v830, %v961
        %v963 = vlaneseq
        %v964 = vshrl.u32 %v963, 7
        %v965 = vsub.s32 2, %v964
        %v966 = vrot.slane %v831, %v965
        %v967 = vlaneseq
        %v968 = vshrl.u32 %v967, 7
        %v969 = vsub.s32 2, %v968
        %v970 = vrot.slane %v832, %v969
        %v971 = vlaneseq
        %v972 = vshrl.u32 %v971, 7
        %v973 = vsub.s32 2, %v972
        %v974 = vrot.slane %v833, %v973
        %v975 = vlaneseq
        %v976 = vshrl.u32 %v975, 7
        %v977 = vsub.s32 2, %v976
        %v978 = vrot.slane %v834, %v977
        %vm979 = vcmp.eq.s32.totalorder %v194, %v950
        %vm980 = vcmp.eq.s32.totalorder %v194, %v954
        %vm981 = vcmp.eq.s32.totalorder %v194, %v958
        %vm982 = vcmp.eq.s32.totalorder %v194, %v962
        %vm983 = vcmp.eq.s32.totalorder %v194, %v966
        %vm984 = vcmp.eq.s32.totalorder %v194, %v970
        %vm985 = vcmp.eq.s32.totalorder %v194, %v974
        %vm986 = vcmp.eq.s32.totalorder %v194, %v978
        %v987 = vsel %vm979, %v352, 0.0
        %v988 = vsel %vm980, %v356, 0.0
        %v989 = vsel %vm981, %v360, 0.0
        %v990 = vsel %vm982, %v364, 0.0
        %v991 = vsel %vm983, %v368, 0.0
        %v992 = vsel %vm984, %v372, 0.0
        %v993 = vsel %vm985, %v376, 0.0
        %v994 = vsel %vm986, %v380, 0.0
        %v995 = vadd.f32 %v939, %v987
        %v996 = vadd.f32 %v940, %v988
        %v997 = vadd.f32 %v941, %v989
        %v998 = vadd.f32 %v942, %v990
        %v999 = vadd.f32 %v943, %v991
        %v1000 = vadd.f32 %v944, %v992
        %v1001 = vadd.f32 %v945, %v993
        %v1002 = vadd.f32 %v946, %v994
        %v1003 = vlaneseq
        %v1004 = vshrl.u32 %v1003, 7
        %v1005 = vsub.s32 3, %v1004
        %v1006 = vrot.slane %v827, %v1005
        %v1007 = vlaneseq
        %v1008 = vshrl.u32 %v1007, 7
        %v1009 = vsub.s32 3, %v1008
        %v1010 = vrot.slane %v828, %v1009
        %v1011 = vlaneseq
        %v1012 = vshrl.u32 %v1011, 7
        %v1013 = vsub.s32 3, %v1012
        %v1014 = vrot.slane %v829, %v1013
        %v1015 = vlaneseq
        %v1016 = vshrl.u32 %v1015, 7
        %v1017 = vsub.s32 3, %v1016
        %v1018 = vrot.slane %v830, %v1017
        %v1019 = vlaneseq
        %v1020 = vshrl.u32 %v1019, 7
        %v1021 = vsub.s32 3, %v1020
        %v1022 = vrot.slane %v831, %v1021
        %v1023 = vlaneseq
        %v1024 = vshrl.u32 %v1023, 7
        %v1025 = vsub.s32 3, %v1024
        %v1026 = vrot.slane %v832, %v1025
        %v1027 = vlaneseq
        %v1028 = vshrl.u32 %v1027, 7
        %v1029 = vsub.s32 3, %v1028
        %v1030 = vrot.slane %v833, %v1029
        %v1031 = vlaneseq
        %v1032 = vshrl.u32 %v1031, 7
        %v1033 = vsub.s32 3, %v1032
        %v1034 = vrot.slane %v834, %v1033
        %vm1035 = vcmp.eq.s32.totalorder %v194, %v1006
        %vm1036 = vcmp.eq.s32.totalorder %v194, %v1010
        %vm1037 = vcmp.eq.s32.totalorder %v194, %v1014
        %vm1038 = vcmp.eq.s32.totalorder %v194, %v1018
        %vm1039 = vcmp.eq.s32.totalorder %v194, %v1022
        %vm1040 = vcmp.eq.s32.totalorder %v194, %v1026
        %vm1041 = vcmp.eq.s32.totalorder %v194, %v1030
        %vm1042 = vcmp.eq.s32.totalorder %v194, %v1034
        %v1043 = vsel %vm1035, %v433, 0.0
        %v1044 = vsel %vm1036, %v437, 0.0
        %v1045 = vsel %vm1037, %v441, 0.0
        %v1046 = vsel %vm1038, %v445, 0.0
        %v1047 = vsel %vm1039, %v449, 0.0
        %v1048 = vsel %vm1040, %v453, 0.0
        %v1049 = vsel %vm1041, %v457, 0.0
        %v1050 = vsel %vm1042, %v461, 0.0
        %v1051 = vadd.f32 %v995, %v1043
        %v1052 = vadd.f32 %v996, %v1044
        %v1053 = vadd.f32 %v997, %v1045
        %v1054 = vadd.f32 %v998, %v1046
        %v1055 = vadd.f32 %v999, %v1047
        %v1056 = vadd.f32 %v1000, %v1048
        %v1057 = vadd.f32 %v1001, %v1049
        %v1058 = vadd.f32 %v1002, %v1050
        %v1059 = vlaneseq
        %v1060 = vshrl.u32 %v1059, 7
        %v1061 = vsub.s32 4, %v1060
        %v1062 = vrot.slane %v827, %v1061
        %v1063 = vlaneseq
        %v1064 = vshrl.u32 %v1063, 7
        %v1065 = vsub.s32 4, %v1064
        %v1066 = vrot.slane %v828, %v1065
        %v1067 = vlaneseq
        %v1068 = vshrl.u32 %v1067, 7
        %v1069 = vsub.s32 4, %v1068
        %v1070 = vrot.slane %v829, %v1069
        %v1071 = vlaneseq
        %v1072 = vshrl.u32 %v1071, 7
        %v1073 = vsub.s32 4, %v1072
        %v1074 = vrot.slane %v830, %v1073
        %v1075 = vlaneseq
        %v1076 = vshrl.u32 %v1075, 7
        %v1077 = vsub.s32 4, %v1076
        %v1078 = vrot.slane %v831, %v1077
        %v1079 = vlaneseq
        %v1080 = vshrl.u32 %v1079, 7
        %v1081 = vsub.s32 4, %v1080
        %v1082 = vrot.slane %v832, %v1081
        %v1083 = vlaneseq
        %v1084 = vshrl.u32 %v1083, 7
        %v1085 = vsub.s32 4, %v1084
        %v1086 = vrot.slane %v833, %v1085
        %v1087 = vlaneseq
        %v1088 = vshrl.u32 %v1087, 7
        %v1089 = vsub.s32 4, %v1088
        %v1090 = vrot.slane %v834, %v1089
        %vm1091 = vcmp.eq.s32.totalorder %v194, %v1062
        %vm1092 = vcmp.eq.s32.totalorder %v194, %v1066
        %vm1093 = vcmp.eq.s32.totalorder %v194, %v1070
        %vm1094 = vcmp.eq.s32.totalorder %v194, %v1074
        %vm1095 = vcmp.eq.s32.totalorder %v194, %v1078
        %vm1096 = vcmp.eq.s32.totalorder %v194, %v1082
        %vm1097 = vcmp.eq.s32.totalorder %v194, %v1086
        %vm1098 = vcmp.eq.s32.totalorder %v194, %v1090
        %v1099 = vsel %vm1091, %v514, 0.0
        %v1100 = vsel %vm1092, %v518, 0.0
        %v1101 = vsel %vm1093, %v522, 0.0
        %v1102 = vsel %vm1094, %v526, 0.0
        %v1103 = vsel %vm1095, %v530, 0.0
        %v1104 = vsel %vm1096, %v534, 0.0
        %v1105 = vsel %vm1097, %v538, 0.0
        %v1106 = vsel %vm1098, %v542, 0.0
        %v1107 = vadd.f32 %v1051, %v1099
        %v1108 = vadd.f32 %v1052, %v1100
        %v1109 = vadd.f32 %v1053, %v1101
        %v1110 = vadd.f32 %v1054, %v1102
        %v1111 = vadd.f32 %v1055, %v1103
        %v1112 = vadd.f32 %v1056, %v1104
        %v1113 = vadd.f32 %v1057, %v1105
        %v1114 = vadd.f32 %v1058, %v1106
        %v1115 = vlaneseq
        %v1116 = vshrl.u32 %v1115, 7
        %v1117 = vsub.s32 5, %v1116
        %v1118 = vrot.slane %v827, %v1117
        %v1119 = vlaneseq
        %v1120 = vshrl.u32 %v1119, 7
        %v1121 = vsub.s32 5, %v1120
        %v1122 = vrot.slane %v828, %v1121
        %v1123 = vlaneseq
        %v1124 = vshrl.u32 %v1123, 7
        %v1125 = vsub.s32 5, %v1124
        %v1126 = vrot.slane %v829, %v1125
        %v1127 = vlaneseq
        %v1128 = vshrl.u32 %v1127, 7
        %v1129 = vsub.s32 5, %v1128
        %v1130 = vrot.slane %v830, %v1129
        %v1131 = vlaneseq
        %v1132 = vshrl.u32 %v1131, 7
        %v1133 = vsub.s32 5, %v1132
        %v1134 = vrot.slane %v831, %v1133
        %v1135 = vlaneseq
        %v1136 = vshrl.u32 %v1135, 7
        %v1137 = vsub.s32 5, %v1136
        %v1138 = vrot.slane %v832, %v1137
        %v1139 = vlaneseq
        %v1140 = vshrl.u32 %v1139, 7
        %v1141 = vsub.s32 5, %v1140
        %v1142 = vrot.slane %v833, %v1141
        %v1143 = vlaneseq
        %v1144 = vshrl.u32 %v1143, 7
        %v1145 = vsub.s32 5, %v1144
        %v1146 = vrot.slane %v834, %v1145
        %vm1147 = vcmp.eq.s32.totalorder %v194, %v1118
        %vm1148 = vcmp.eq.s32.totalorder %v194, %v1122
        %vm1149 = vcmp.eq.s32.totalorder %v194, %v1126
        %vm1150 = vcmp.eq.s32.totalorder %v194, %v1130
        %vm1151 = vcmp.eq.s32.totalorder %v194, %v1134
        %vm1152 = vcmp.eq.s32.totalorder %v194, %v1138
        %vm1153 = vcmp.eq.s32.totalorder %v194, %v1142
        %vm1154 = vcmp.eq.s32.totalorder %v194, %v1146
        %v1155 = vsel %vm1147, %v595, 0.0
        %v1156 = vsel %vm1148, %v599, 0.0
        %v1157 = vsel %vm1149, %v603, 0.0
        %v1158 = vsel %vm1150, %v607, 0.0
        %v1159 = vsel %vm1151, %v611, 0.0
        %v1160 = vsel %vm1152, %v615, 0.0
        %v1161 = vsel %vm1153, %v619, 0.0
        %v1162 = vsel %vm1154, %v623, 0.0
        %v1163 = vadd.f32 %v1107, %v1155
        %v1164 = vadd.f32 %v1108, %v1156
        %v1165 = vadd.f32 %v1109, %v1157
        %v1166 = vadd.f32 %v1110, %v1158
        %v1167 = vadd.f32 %v1111, %v1159
        %v1168 = vadd.f32 %v1112, %v1160
        %v1169 = vadd.f32 %v1113, %v1161
        %v1170 = vadd.f32 %v1114, %v1162
        %v1171 = vlaneseq
        %v1172 = vshrl.u32 %v1171, 7
        %v1173 = vsub.s32 6, %v1172
        %v1174 = vrot.slane %v827, %v1173
        %v1175 = vlaneseq
        %v1176 = vshrl.u32 %v1175, 7
        %v1177 = vsub.s32 6, %v1176
        %v1178 = vrot.slane %v828, %v1177
        %v1179 = vlaneseq
        %v1180 = vshrl.u32 %v1179, 7
        %v1181 = vsub.s32 6, %v1180
        %v1182 = vrot.slane %v829, %v1181
        %v1183 = vlaneseq
        %v1184 = vshrl.u32 %v1183, 7
        %v1185 = vsub.s32 6, %v1184
        %v1186 = vrot.slane %v830, %v1185
        %v1187 = vlaneseq
        %v1188 = vshrl.u32 %v1187, 7
        %v1189 = vsub.s32 6, %v1188
        %v1190 = vrot.slane %v831, %v1189
        %v1191 = vlaneseq
        %v1192 = vshrl.u32 %v1191, 7
        %v1193 = vsub.s32 6, %v1192
        %v1194 = vrot.slane %v832, %v1193
        %v1195 = vlaneseq
        %v1196 = vshrl.u32 %v1195, 7
        %v1197 = vsub.s32 6, %v1196
        %v1198 = vrot.slane %v833, %v1197
        %v1199 = vlaneseq
        %v1200 = vshrl.u32 %v1199, 7
        %v1201 = vsub.s32 6, %v1200
        %v1202 = vrot.slane %v834, %v1201
        %vm1203 = vcmp.eq.s32.totalorder %v194, %v1174
        %vm1204 = vcmp.eq.s32.totalorder %v194, %v1178
        %vm1205 = vcmp.eq.s32.totalorder %v194, %v1182
        %vm1206 = vcmp.eq.s32.totalorder %v194, %v1186
        %vm1207 = vcmp.eq.s32.totalorder %v194, %v1190
        %vm1208 = vcmp.eq.s32.totalorder %v194, %v1194
        %vm1209 = vcmp.eq.s32.totalorder %v194, %v1198
        %vm1210 = vcmp.eq.s32.totalorder %v194, %v1202
        %v1211 = vsel %vm1203, %v676, 0.0
        %v1212 = vsel %vm1204, %v680, 0.0
        %v1213 = vsel %vm1205, %v684, 0.0
        %v1214 = vsel %vm1206, %v688, 0.0
        %v1215 = vsel %vm1207, %v692, 0.0
        %v1216 = vsel %vm1208, %v696, 0.0
        %v1217 = vsel %vm1209, %v700, 0.0
        %v1218 = vsel %vm1210, %v704, 0.0
        %v1219 = vadd.f32 %v1163, %v1211
        %v1220 = vadd.f32 %v1164, %v1212
        %v1221 = vadd.f32 %v1165, %v1213
        %v1222 = vadd.f32 %v1166, %v1214
        %v1223 = vadd.f32 %v1167, %v1215
        %v1224 = vadd.f32 %v1168, %v1216
        %v1225 = vadd.f32 %v1169, %v1217
        %v1226 = vadd.f32 %v1170, %v1218
        %v1227 = vlaneseq
        %v1228 = vshrl.u32 %v1227, 7
        %v1229 = vsub.s32 7, %v1228
        %v1230 = vrot.slane %v827, %v1229
        %v1231 = vlaneseq
        %v1232 = vshrl.u32 %v1231, 7
        %v1233 = vsub.s32 7, %v1232
        %v1234 = vrot.slane %v828, %v1233
        %v1235 = vlaneseq
        %v1236 = vshrl.u32 %v1235, 7
        %v1237 = vsub.s32 7, %v1236
        %v1238 = vrot.slane %v829, %v1237
        %v1239 = vlaneseq
        %v1240 = vshrl.u32 %v1239, 7
        %v1241 = vsub.s32 7, %v1240
        %v1242 = vrot.slane %v830, %v1241
        %v1243 = vlaneseq
        %v1244 = vshrl.u32 %v1243, 7
        %v1245 = vsub.s32 7, %v1244
        %v1246 = vrot.slane %v831, %v1245
        %v1247 = vlaneseq
        %v1248 = vshrl.u32 %v1247, 7
        %v1249 = vsub.s32 7, %v1248
        %v1250 = vrot.slane %v832, %v1249
        %v1251 = vlaneseq
        %v1252 = vshrl.u32 %v1251, 7
        %v1253 = vsub.s32 7, %v1252
        %v1254 = vrot.slane %v833, %v1253
        %v1255 = vlaneseq
        %v1256 = vshrl.u32 %v1255, 7
        %v1257 = vsub.s32 7, %v1256
        %v1258 = vrot.slane %v834, %v1257
        %vm1259 = vcmp.eq.s32.totalorder %v194, %v1230
        %vm1260 = vcmp.eq.s32.totalorder %v194, %v1234
        %vm1261 = vcmp.eq.s32.totalorder %v194, %v1238
        %vm1262 = vcmp.eq.s32.totalorder %v194, %v1242
        %vm1263 = vcmp.eq.s32.totalorder %v194, %v1246
        %vm1264 = vcmp.eq.s32.totalorder %v194, %v1250
        %vm1265 = vcmp.eq.s32.totalorder %v194, %v1254
        %vm1266 = vcmp.eq.s32.totalorder %v194, %v1258
        %v1267 = vsel %vm1259, %v757, 0.0
        %v1268 = vsel %vm1260, %v761, 0.0
        %v1269 = vsel %vm1261, %v765, 0.0
        %v1270 = vsel %vm1262, %v769, 0.0
        %v1271 = vsel %vm1263, %v773, 0.0
        %v1272 = vsel %vm1264, %v777, 0.0
        %v1273 = vsel %vm1265, %v781, 0.0
        %v1274 = vsel %vm1266, %v785, 0.0
        %v1275 = vadd.f32 %v1219, %v1267
        %v1276 = vadd.f32 %v1220, %v1268
        %v1277 = vadd.f32 %v1221, %v1269
        %v1278 = vadd.f32 %v1222, %v1270
        %v1279 = vadd.f32 %v1223, %v1271
        %v1280 = vadd.f32 %v1224, %v1272
        %v1281 = vadd.f32 %v1225, %v1273
        %v1282 = vadd.f32 %v1226, %v1274
        %vm1283 = vcmask 130048
        %v1284 = vsel %vm1283, %v169, -inf
        %v1285 = vrot.slane %v1284, 4
        %v1286 = vmax.f32 %v1284, %v1285
        %v1287 = vrot.slane %v1286, 2
        %v1288 = vmax.f32 %v1286, %v1287
        %v1289 = vrot.slane %v1288, 1
        %v1290 = vmax.f32 %v1288, %v1289
        %v1291 = vsel %vm1283, %v170, -inf
        %v1292 = vrot.slane %v1291, 4
        %v1293 = vmax.f32 %v1291, %v1292
        %v1294 = vrot.slane %v1293, 2
        %v1295 = vmax.f32 %v1293, %v1294
        %v1296 = vrot.slane %v1295, 1
        %v1297 = vmax.f32 %v1295, %v1296
        %v1298 = vsel %vm1283, %v171, -inf
        %v1299 = vrot.slane %v1298, 4
        %v1300 = vmax.f32 %v1298, %v1299
        %v1301 = vrot.slane %v1300, 2
        %v1302 = vmax.f32 %v1300, %v1301
        %v1303 = vrot.slane %v1302, 1
        %v1304 = vmax.f32 %v1302, %v1303
        %v1305 = vsel %vm1283, %v172, -inf
        %v1306 = vrot.slane %v1305, 4
        %v1307 = vmax.f32 %v1305, %v1306
        %v1308 = vrot.slane %v1307, 2
        %v1309 = vmax.f32 %v1307, %v1308
        %v1310 = vrot.slane %v1309, 1
        %v1311 = vmax.f32 %v1309, %v1310
        %v1312 = vsel %vm1283, %v173, -inf
        %v1313 = vrot.slane %v1312, 4
        %v1314 = vmax.f32 %v1312, %v1313
        %v1315 = vrot.slane %v1314, 2
        %v1316 = vmax.f32 %v1314, %v1315
        %v1317 = vrot.slane %v1316, 1
        %v1318 = vmax.f32 %v1316, %v1317
        %v1319 = vsel %vm1283, %v174, -inf
        %v1320 = vrot.slane %v1319, 4
        %v1321 = vmax.f32 %v1319, %v1320
        %v1322 = vrot.slane %v1321, 2
        %v1323 = vmax.f32 %v1321, %v1322
        %v1324 = vrot.slane %v1323, 1
        %v1325 = vmax.f32 %v1323, %v1324
        %v1326 = vsel %vm1283, %v175, -inf
        %v1327 = vrot.slane %v1326, 4
        %v1328 = vmax.f32 %v1326, %v1327
        %v1329 = vrot.slane %v1328, 2
        %v1330 = vmax.f32 %v1328, %v1329
        %v1331 = vrot.slane %v1330, 1
        %v1332 = vmax.f32 %v1330, %v1331
        %v1333 = vsel %vm1283, %v176, -inf
        %v1334 = vrot.slane %v1333, 4
        %v1335 = vmax.f32 %v1333, %v1334
        %v1336 = vrot.slane %v1335, 2
        %v1337 = vmax.f32 %v1335, %v1336
        %v1338 = vrot.slane %v1337, 1
        %v1339 = vmax.f32 %v1337, %v1338
        %vm1340 = vcmask 64512
        %v1341 = vsel %vm1340, %v177, -inf
        %1342 = vmax.xlane.f32.xlu0 %v1341
        %v1343 = vpop.xlane.xlu0 %1342
        %v1344 = vsel %vm1340, %v178, -inf
        %1345 = vmax.xlane.f32.xlu0 %v1344
        %v1346 = vpop.xlane.xlu0 %1345
        %v1347 = vsel %vm1340, %v179, -inf
        %1348 = vmax.xlane.f32.xlu0 %v1347
        %v1349 = vpop.xlane.xlu0 %1348
        %v1350 = vsel %vm1340, %v180, -inf
        %1351 = vmax.xlane.f32.xlu0 %v1350
        %v1352 = vpop.xlane.xlu0 %1351
        %v1353 = vsel %vm1340, %v181, -inf
        %1354 = vmax.xlane.f32.xlu0 %v1353
        %v1355 = vpop.xlane.xlu0 %1354
        %v1356 = vsel %vm1340, %v182, -inf
        %1357 = vmax.xlane.f32.xlu0 %v1356
        %v1358 = vpop.xlane.xlu0 %1357
        %v1359 = vsel %vm1340, %v183, -inf
        %1360 = vmax.xlane.f32.xlu0 %v1359
        %v1361 = vpop.xlane.xlu0 %1360
        %v1362 = vsel %vm1340, %v184, -inf
        %1363 = vmax.xlane.f32.xlu0 %v1362
        %v1364 = vpop.xlane.xlu0 %1363
        %v1365 = vsel %vm1340, %v185, -inf
        %1366 = vmax.xlane.f32.xlu0 %v1365
        %v1367 = vpop.xlane.xlu0 %1366
        %v1368 = vsel %vm1340, %v186, -inf
        %1369 = vmax.xlane.f32.xlu0 %v1368
        %v1370 = vpop.xlane.xlu0 %1369
        %v1371 = vsel %vm1340, %v187, -inf
        %1372 = vmax.xlane.f32.xlu0 %v1371
        %v1373 = vpop.xlane.xlu0 %1372
        %v1374 = vsel %vm1340, %v188, -inf
        %1375 = vmax.xlane.f32.xlu0 %v1374
        %v1376 = vpop.xlane.xlu0 %1375
        %v1377 = vsel %vm1340, %v189, -inf
        %1378 = vmax.xlane.f32.xlu0 %v1377
        %v1379 = vpop.xlane.xlu0 %1378
        %v1380 = vsel %vm1340, %v190, -inf
        %1381 = vmax.xlane.f32.xlu0 %v1380
        %v1382 = vpop.xlane.xlu0 %1381
        %v1383 = vsel %vm1340, %v191, -inf
        %1384 = vmax.xlane.f32.xlu0 %v1383
        %v1385 = vpop.xlane.xlu0 %1384
        %v1386 = vsel %vm1340, %v192, -inf
        %1387 = vmax.xlane.f32.xlu0 %v1386
        %v1388 = vpop.xlane.xlu0 %1387
        %v1389 = vadd.s32 %v194, 8
        %v1390 = vlaneseq
        %v1391 = vand.u32 %v1390, 127
        %vm1392 = vcmp.gt.f32.partialorder %v1343, %v1290
        %vm1393 = vcmp.gt.f32.partialorder %v1346, %v1290
        %vm1394 = vcmp.gt.f32.partialorder %v1349, %v1297
        %vm1395 = vcmp.gt.f32.partialorder %v1352, %v1297
        %vm1396 = vcmp.gt.f32.partialorder %v1355, %v1304
        %vm1397 = vcmp.gt.f32.partialorder %v1358, %v1304
        %vm1398 = vcmp.gt.f32.partialorder %v1361, %v1311
        %vm1399 = vcmp.gt.f32.partialorder %v1364, %v1311
        %vm1400 = vcmp.gt.f32.partialorder %v1367, %v1318
        %vm1401 = vcmp.gt.f32.partialorder %v1370, %v1318
        %vm1402 = vcmp.gt.f32.partialorder %v1373, %v1325
        %vm1403 = vcmp.gt.f32.partialorder %v1376, %v1325
        %vm1404 = vcmp.gt.f32.partialorder %v1379, %v1332
        %vm1405 = vcmp.gt.f32.partialorder %v1382, %v1332
        %vm1406 = vcmp.gt.f32.partialorder %v1385, %v1339
        %vm1407 = vcmp.gt.f32.partialorder %v1388, %v1339
        %vm1408 = vcmp.eq.f32.partialorder %v1343, %v1290
        %vm1409 = vcmp.eq.f32.partialorder %v1346, %v1290
        %vm1410 = vcmp.eq.f32.partialorder %v1349, %v1297
        %vm1411 = vcmp.eq.f32.partialorder %v1352, %v1297
        %vm1412 = vcmp.eq.f32.partialorder %v1355, %v1304
        %vm1413 = vcmp.eq.f32.partialorder %v1358, %v1304
        %vm1414 = vcmp.eq.f32.partialorder %v1361, %v1311
        %vm1415 = vcmp.eq.f32.partialorder %v1364, %v1311
        %vm1416 = vcmp.eq.f32.partialorder %v1367, %v1318
        %vm1417 = vcmp.eq.f32.partialorder %v1370, %v1318
        %vm1418 = vcmp.eq.f32.partialorder %v1373, %v1325
        %vm1419 = vcmp.eq.f32.partialorder %v1376, %v1325
        %vm1420 = vcmp.eq.f32.partialorder %v1379, %v1332
        %vm1421 = vcmp.eq.f32.partialorder %v1382, %v1332
        %vm1422 = vcmp.eq.f32.partialorder %v1385, %v1339
        %vm1423 = vcmp.eq.f32.partialorder %v1388, %v1339
        %vm1424 = vcmp.lt.s32.totalorder %v194, %v1391
        %vm1425 = vcmp.lt.s32.totalorder %v1389, %v1391
        %vm1426 = vmand %vm1408, %vm1424
        %vm1427 = vmand %vm1409, %vm1425
        %vm1428 = vmand %vm1410, %vm1424
        %vm1429 = vmand %vm1411, %vm1425
        %vm1430 = vmand %vm1412, %vm1424
        %vm1431 = vmand %vm1413, %vm1425
        %vm1432 = vmand %vm1414, %vm1424
        %vm1433 = vmand %vm1415, %vm1425
        %vm1434 = vmand %vm1416, %vm1424
        %vm1435 = vmand %vm1417, %vm1425
        %vm1436 = vmand %vm1418, %vm1424
        %vm1437 = vmand %vm1419, %vm1425
        %vm1438 = vmand %vm1420, %vm1424
        %vm1439 = vmand %vm1421, %vm1425
        %vm1440 = vmand %vm1422, %vm1424
        %vm1441 = vmand %vm1423, %vm1425
        %vm1442 = vmor %vm1392, %vm1426
        %vm1443 = vmor %vm1393, %vm1427
        %vm1444 = vmor %vm1394, %vm1428
        %vm1445 = vmor %vm1395, %vm1429
        %vm1446 = vmor %vm1396, %vm1430
        %vm1447 = vmor %vm1397, %vm1431
        %vm1448 = vmor %vm1398, %vm1432
        %vm1449 = vmor %vm1399, %vm1433
        %vm1450 = vmor %vm1400, %vm1434
        %vm1451 = vmor %vm1401, %vm1435
        %vm1452 = vmor %vm1402, %vm1436
        %vm1453 = vmor %vm1403, %vm1437
        %vm1454 = vmor %vm1404, %vm1438
        %vm1455 = vmor %vm1405, %vm1439
        %vm1456 = vmor %vm1406, %vm1440
        %vm1457 = vmor %vm1407, %vm1441
        %v1458 = vsel %vm1442, 1, 0
        %v1459 = vsel %vm1443, 1, 0
        %v1460 = vsel %vm1444, 1, 0
        %v1461 = vsel %vm1445, 1, 0
        %v1462 = vsel %vm1446, 1, 0
        %v1463 = vsel %vm1447, 1, 0
        %v1464 = vsel %vm1448, 1, 0
        %v1465 = vsel %vm1449, 1, 0
        %v1466 = vsel %vm1450, 1, 0
        %v1467 = vsel %vm1451, 1, 0
        %v1468 = vsel %vm1452, 1, 0
        %v1469 = vsel %vm1453, 1, 0
        %v1470 = vsel %vm1454, 1, 0
        %v1471 = vsel %vm1455, 1, 0
        %v1472 = vsel %vm1456, 1, 0
        %v1473 = vsel %vm1457, 1, 0
        %v1474 = vsel %vm1283, %v1458, 0
        %v1475 = vsel %vm1283, %v1459, 0
        %v1476 = vadd.s32 %v1474, %v1475
        %v1477 = vrot.slane %v1476, 4
        %v1478 = vadd.s32 %v1476, %v1477
        %v1479 = vrot.slane %v1478, 2
        %v1480 = vadd.s32 %v1478, %v1479
        %v1481 = vrot.slane %v1480, 1
        %v1482 = vadd.s32 %v1480, %v1481
        %v1483 = vsel %vm1283, %v1460, 0
        %v1484 = vsel %vm1283, %v1461, 0
        %v1485 = vadd.s32 %v1483, %v1484
        %v1486 = vrot.slane %v1485, 4
        %v1487 = vadd.s32 %v1485, %v1486
        %v1488 = vrot.slane %v1487, 2
        %v1489 = vadd.s32 %v1487, %v1488
        %v1490 = vrot.slane %v1489, 1
        %v1491 = vadd.s32 %v1489, %v1490
        %v1492 = vsel %vm1283, %v1462, 0
        %v1493 = vsel %vm1283, %v1463, 0
        %v1494 = vadd.s32 %v1492, %v1493
        %v1495 = vrot.slane %v1494, 4
        %v1496 = vadd.s32 %v1494, %v1495
        %v1497 = vrot.slane %v1496, 2
        %v1498 = vadd.s32 %v1496, %v1497
        %v1499 = vrot.slane %v1498, 1
        %v1500 = vadd.s32 %v1498, %v1499
        %v1501 = vsel %vm1283, %v1464, 0
        %v1502 = vsel %vm1283, %v1465, 0
        %v1503 = vadd.s32 %v1501, %v1502
        %v1504 = vrot.slane %v1503, 4
        %v1505 = vadd.s32 %v1503, %v1504
        %v1506 = vrot.slane %v1505, 2
        %v1507 = vadd.s32 %v1505, %v1506
        %v1508 = vrot.slane %v1507, 1
        %v1509 = vadd.s32 %v1507, %v1508
        %v1510 = vsel %vm1283, %v1466, 0
        %v1511 = vsel %vm1283, %v1467, 0
        %v1512 = vadd.s32 %v1510, %v1511
        %v1513 = vrot.slane %v1512, 4
        %v1514 = vadd.s32 %v1512, %v1513
        %v1515 = vrot.slane %v1514, 2
        %v1516 = vadd.s32 %v1514, %v1515
        %v1517 = vrot.slane %v1516, 1
        %v1518 = vadd.s32 %v1516, %v1517
        %v1519 = vsel %vm1283, %v1468, 0
        %v1520 = vsel %vm1283, %v1469, 0
        %v1521 = vadd.s32 %v1519, %v1520
        %v1522 = vrot.slane %v1521, 4
        %v1523 = vadd.s32 %v1521, %v1522
        %v1524 = vrot.slane %v1523, 2
        %v1525 = vadd.s32 %v1523, %v1524
        %v1526 = vrot.slane %v1525, 1
        %v1527 = vadd.s32 %v1525, %v1526
        %v1528 = vsel %vm1283, %v1470, 0
        %v1529 = vsel %vm1283, %v1471, 0
        %v1530 = vadd.s32 %v1528, %v1529
        %v1531 = vrot.slane %v1530, 4
        %v1532 = vadd.s32 %v1530, %v1531
        %v1533 = vrot.slane %v1532, 2
        %v1534 = vadd.s32 %v1532, %v1533
        %v1535 = vrot.slane %v1534, 1
        %v1536 = vadd.s32 %v1534, %v1535
        %v1537 = vsel %vm1283, %v1472, 0
        %v1538 = vsel %vm1283, %v1473, 0
        %v1539 = vadd.s32 %v1537, %v1538
        %v1540 = vrot.slane %v1539, 4
        %v1541 = vadd.s32 %v1539, %v1540
        %v1542 = vrot.slane %v1541, 2
        %v1543 = vadd.s32 %v1541, %v1542
        %v1544 = vrot.slane %v1543, 1
        %v1545 = vadd.s32 %v1543, %v1544
        %v1546 = vadd.s32 %v194, 16
        %v1547 = vadd.s32 %v194, 24
        %v1548 = vmul.u32 %v1482, 8
        %v1549 = vmul.u32 %v1491, 8
        %v1550 = vmul.u32 %v1500, 8
        %v1551 = vmul.u32 %v1509, 8
        %v1552 = vmul.u32 %v1518, 8
        %v1553 = vmul.u32 %v1527, 8
        %v1554 = vmul.u32 %v1536, 8
        %v1555 = vmul.u32 %v1545, 8
        %vm1556 = vcmp.ge.s32.totalorder %v194, %v1548
        %vm1557 = vcmp.ge.s32.totalorder %v1389, %v1548
        %vm1558 = vcmp.ge.s32.totalorder %v1546, %v1548
        %vm1559 = vcmp.ge.s32.totalorder %v1547, %v1548
        %vm1560 = vcmp.ge.s32.totalorder %v194, %v1549
        %vm1561 = vcmp.ge.s32.totalorder %v1389, %v1549
        %vm1562 = vcmp.ge.s32.totalorder %v1546, %v1549
        %vm1563 = vcmp.ge.s32.totalorder %v1547, %v1549
        %vm1564 = vcmp.ge.s32.totalorder %v194, %v1550
        %vm1565 = vcmp.ge.s32.totalorder %v1389, %v1550
        %vm1566 = vcmp.ge.s32.totalorder %v1546, %v1550
        %vm1567 = vcmp.ge.s32.totalorder %v1547, %v1550
        %vm1568 = vcmp.ge.s32.totalorder %v194, %v1551
        %vm1569 = vcmp.ge.s32.totalorder %v1389, %v1551
        %vm1570 = vcmp.ge.s32.totalorder %v1546, %v1551
        %vm1571 = vcmp.ge.s32.totalorder %v1547, %v1551
        %vm1572 = vcmp.ge.s32.totalorder %v194, %v1552
        %vm1573 = vcmp.ge.s32.totalorder %v1389, %v1552
        %vm1574 = vcmp.ge.s32.totalorder %v1546, %v1552
        %vm1575 = vcmp.ge.s32.totalorder %v1547, %v1552
        %vm1576 = vcmp.ge.s32.totalorder %v194, %v1553
        %vm1577 = vcmp.ge.s32.totalorder %v1389, %v1553
        %vm1578 = vcmp.ge.s32.totalorder %v1546, %v1553
        %vm1579 = vcmp.ge.s32.totalorder %v1547, %v1553
        %vm1580 = vcmp.ge.s32.totalorder %v194, %v1554
        %vm1581 = vcmp.ge.s32.totalorder %v1389, %v1554
        %vm1582 = vcmp.ge.s32.totalorder %v1546, %v1554
        %vm1583 = vcmp.ge.s32.totalorder %v1547, %v1554
        %vm1584 = vcmp.ge.s32.totalorder %v194, %v1555
        %vm1585 = vcmp.ge.s32.totalorder %v1389, %v1555
        %vm1586 = vcmp.ge.s32.totalorder %v1546, %v1555
        %vm1587 = vcmp.ge.s32.totalorder %v1547, %v1555
        %v1588 = vadd.s32 %v1548, 8
        %v1589 = vadd.s32 %v1549, 8
        %v1590 = vadd.s32 %v1550, 8
        %v1591 = vadd.s32 %v1551, 8
        %v1592 = vadd.s32 %v1552, 8
        %v1593 = vadd.s32 %v1553, 8
        %v1594 = vadd.s32 %v1554, 8
        %v1595 = vadd.s32 %v1555, 8
        %vm1596 = vcmp.lt.s32.totalorder %v194, %v1588
        %vm1597 = vcmp.lt.s32.totalorder %v1389, %v1588
        %vm1598 = vcmp.lt.s32.totalorder %v1546, %v1588
        %vm1599 = vcmp.lt.s32.totalorder %v1547, %v1588
        %vm1600 = vcmp.lt.s32.totalorder %v194, %v1589
        %vm1601 = vcmp.lt.s32.totalorder %v1389, %v1589
        %vm1602 = vcmp.lt.s32.totalorder %v1546, %v1589
        %vm1603 = vcmp.lt.s32.totalorder %v1547, %v1589
        %vm1604 = vcmp.lt.s32.totalorder %v194, %v1590
        %vm1605 = vcmp.lt.s32.totalorder %v1389, %v1590
        %vm1606 = vcmp.lt.s32.totalorder %v1546, %v1590
        %vm1607 = vcmp.lt.s32.totalorder %v1547, %v1590
        %vm1608 = vcmp.lt.s32.totalorder %v194, %v1591
        %vm1609 = vcmp.lt.s32.totalorder %v1389, %v1591
        %vm1610 = vcmp.lt.s32.totalorder %v1546, %v1591
        %vm1611 = vcmp.lt.s32.totalorder %v1547, %v1591
        %vm1612 = vcmp.lt.s32.totalorder %v194, %v1592
        %vm1613 = vcmp.lt.s32.totalorder %v1389, %v1592
        %vm1614 = vcmp.lt.s32.totalorder %v1546, %v1592
        %vm1615 = vcmp.lt.s32.totalorder %v1547, %v1592
        %vm1616 = vcmp.lt.s32.totalorder %v194, %v1593
        %vm1617 = vcmp.lt.s32.totalorder %v1389, %v1593
        %vm1618 = vcmp.lt.s32.totalorder %v1546, %v1593
        %vm1619 = vcmp.lt.s32.totalorder %v1547, %v1593
        %vm1620 = vcmp.lt.s32.totalorder %v194, %v1594
        %vm1621 = vcmp.lt.s32.totalorder %v1389, %v1594
        %vm1622 = vcmp.lt.s32.totalorder %v1546, %v1594
        %vm1623 = vcmp.lt.s32.totalorder %v1547, %v1594
        %vm1624 = vcmp.lt.s32.totalorder %v194, %v1595
        %vm1625 = vcmp.lt.s32.totalorder %v1389, %v1595
        %vm1626 = vcmp.lt.s32.totalorder %v1546, %v1595
        %vm1627 = vcmp.lt.s32.totalorder %v1547, %v1595
        %vm1628 = vmand %vm1556, %vm1596
        %vm1629 = vmand %vm1557, %vm1597
        %vm1630 = vmand %vm1558, %vm1598
        %vm1631 = vmand %vm1559, %vm1599
        %vm1632 = vmand %vm1560, %vm1600
        %vm1633 = vmand %vm1561, %vm1601
        %vm1634 = vmand %vm1562, %vm1602
        %vm1635 = vmand %vm1563, %vm1603
        %vm1636 = vmand %vm1564, %vm1604
        %vm1637 = vmand %vm1565, %vm1605
        %vm1638 = vmand %vm1566, %vm1606
        %vm1639 = vmand %vm1567, %vm1607
        %vm1640 = vmand %vm1568, %vm1608
        %vm1641 = vmand %vm1569, %vm1609
        %vm1642 = vmand %vm1570, %vm1610
        %vm1643 = vmand %vm1571, %vm1611
        %vm1644 = vmand %vm1572, %vm1612
        %vm1645 = vmand %vm1573, %vm1613
        %vm1646 = vmand %vm1574, %vm1614
        %vm1647 = vmand %vm1575, %vm1615
        %vm1648 = vmand %vm1576, %vm1616
        %vm1649 = vmand %vm1577, %vm1617
        %vm1650 = vmand %vm1578, %vm1618
        %vm1651 = vmand %vm1579, %vm1619
        %vm1652 = vmand %vm1580, %vm1620
        %vm1653 = vmand %vm1581, %vm1621
        %vm1654 = vmand %vm1582, %vm1622
        %vm1655 = vmand %vm1583, %vm1623
        %vm1656 = vmand %vm1584, %vm1624
        %vm1657 = vmand %vm1585, %vm1625
        %vm1658 = vmand %vm1586, %vm1626
        %vm1659 = vmand %vm1587, %vm1627
        %v1660 = vsel %vm1628, %v1275, 0.0
        %v1661 = vsel %vm1629, %v1275, 0.0
        %v1662 = vsel %vm1630, %v1275, 0.0
        %v1663 = vsel %vm1631, %v1275, 0.0
        %v1664 = vsel %vm1632, %v1276, 0.0
        %v1665 = vsel %vm1633, %v1276, 0.0
        %v1666 = vsel %vm1634, %v1276, 0.0
        %v1667 = vsel %vm1635, %v1276, 0.0
        %v1668 = vsel %vm1636, %v1277, 0.0
        %v1669 = vsel %vm1637, %v1277, 0.0
        %v1670 = vsel %vm1638, %v1277, 0.0
        %v1671 = vsel %vm1639, %v1277, 0.0
        %v1672 = vsel %vm1640, %v1278, 0.0
        %v1673 = vsel %vm1641, %v1278, 0.0
        %v1674 = vsel %vm1642, %v1278, 0.0
        %v1675 = vsel %vm1643, %v1278, 0.0
        %v1676 = vsel %vm1644, %v1279, 0.0
        %v1677 = vsel %vm1645, %v1279, 0.0
        %v1678 = vsel %vm1646, %v1279, 0.0
        %v1679 = vsel %vm1647, %v1279, 0.0
        %v1680 = vsel %vm1648, %v1280, 0.0
        %v1681 = vsel %vm1649, %v1280, 0.0
        %v1682 = vsel %vm1650, %v1280, 0.0
        %v1683 = vsel %vm1651, %v1280, 0.0
        %v1684 = vsel %vm1652, %v1281, 0.0
        %v1685 = vsel %vm1653, %v1281, 0.0
        %v1686 = vsel %vm1654, %v1281, 0.0
        %v1687 = vsel %vm1655, %v1281, 0.0
        %v1688 = vsel %vm1656, %v1282, 0.0
        %v1689 = vsel %vm1657, %v1282, 0.0
        %v1690 = vsel %vm1658, %v1282, 0.0
        %v1691 = vsel %vm1659, %v1282, 0.0
        %v1692 = vsel %vm1283, %v1660, 0.0
        %1693 = vadd.xlane.f32.xlu0 %v1692
        %v1694 = vpop.xlane.xlu0 %1693
        %v1695 = vsel %vm1283, %v1661, 0.0
        %1696 = vadd.xlane.f32.xlu0 %v1695
        %v1697 = vpop.xlane.xlu0 %1696
        %v1698 = vsel %vm1283, %v1662, 0.0
        %1699 = vadd.xlane.f32.xlu0 %v1698
        %v1700 = vpop.xlane.xlu0 %1699
        %v1701 = vsel %vm1283, %v1663, 0.0
        %1702 = vadd.xlane.f32.xlu0 %v1701
        %v1703 = vpop.xlane.xlu0 %1702
        %v1704 = vsel %vm1283, %v1664, 0.0
        %1705 = vadd.xlane.f32.xlu0 %v1704
        %v1706 = vpop.xlane.xlu0 %1705
        %v1707 = vsel %vm1283, %v1665, 0.0
        %1708 = vadd.xlane.f32.xlu0 %v1707
        %v1709 = vpop.xlane.xlu0 %1708
        %v1710 = vsel %vm1283, %v1666, 0.0
        %1711 = vadd.xlane.f32.xlu0 %v1710
        %v1712 = vpop.xlane.xlu0 %1711
        %v1713 = vsel %vm1283, %v1667, 0.0
        %1714 = vadd.xlane.f32.xlu0 %v1713
        %v1715 = vpop.xlane.xlu0 %1714
        %v1716 = vsel %vm1283, %v1668, 0.0
        %1717 = vadd.xlane.f32.xlu0 %v1716
        %v1718 = vpop.xlane.xlu0 %1717
        %v1719 = vsel %vm1283, %v1669, 0.0
        %1720 = vadd.xlane.f32.xlu0 %v1719
        %v1721 = vpop.xlane.xlu0 %1720
        %v1722 = vsel %vm1283, %v1670, 0.0
        %1723 = vadd.xlane.f32.xlu0 %v1722
        %v1724 = vpop.xlane.xlu0 %1723
        %v1725 = vsel %vm1283, %v1671, 0.0
        %1726 = vadd.xlane.f32.xlu0 %v1725
        %v1727 = vpop.xlane.xlu0 %1726
        %v1728 = vsel %vm1283, %v1672, 0.0
        %1729 = vadd.xlane.f32.xlu0 %v1728
        %v1730 = vpop.xlane.xlu0 %1729
        %v1731 = vsel %vm1283, %v1673, 0.0
        %1732 = vadd.xlane.f32.xlu0 %v1731
        %v1733 = vpop.xlane.xlu0 %1732
        %v1734 = vsel %vm1283, %v1674, 0.0
        %1735 = vadd.xlane.f32.xlu0 %v1734
        %v1736 = vpop.xlane.xlu0 %1735
        %v1737 = vsel %vm1283, %v1675, 0.0
        %1738 = vadd.xlane.f32.xlu0 %v1737
        %v1739 = vpop.xlane.xlu0 %1738
        %v1740 = vsel %vm1283, %v1676, 0.0
        %1741 = vadd.xlane.f32.xlu0 %v1740
        %v1742 = vpop.xlane.xlu0 %1741
        %v1743 = vsel %vm1283, %v1677, 0.0
        %1744 = vadd.xlane.f32.xlu0 %v1743
        %v1745 = vpop.xlane.xlu0 %1744
        %v1746 = vsel %vm1283, %v1678, 0.0
        %1747 = vadd.xlane.f32.xlu0 %v1746
        %v1748 = vpop.xlane.xlu0 %1747
        %v1749 = vsel %vm1283, %v1679, 0.0
        %1750 = vadd.xlane.f32.xlu0 %v1749
        %v1751 = vpop.xlane.xlu0 %1750
        %v1752 = vsel %vm1283, %v1680, 0.0
        %1753 = vadd.xlane.f32.xlu0 %v1752
        %v1754 = vpop.xlane.xlu0 %1753
        %v1755 = vsel %vm1283, %v1681, 0.0
        %1756 = vadd.xlane.f32.xlu0 %v1755
        %v1757 = vpop.xlane.xlu0 %1756
        %v1758 = vsel %vm1283, %v1682, 0.0
        %1759 = vadd.xlane.f32.xlu0 %v1758
        %v1760 = vpop.xlane.xlu0 %1759
        %v1761 = vsel %vm1283, %v1683, 0.0
        %1762 = vadd.xlane.f32.xlu0 %v1761
        %v1763 = vpop.xlane.xlu0 %1762
        %v1764 = vsel %vm1283, %v1684, 0.0
        %1765 = vadd.xlane.f32.xlu0 %v1764
        %v1766 = vpop.xlane.xlu0 %1765
        %v1767 = vsel %vm1283, %v1685, 0.0
        %1768 = vadd.xlane.f32.xlu0 %v1767
        %v1769 = vpop.xlane.xlu0 %1768
        %v1770 = vsel %vm1283, %v1686, 0.0
        %1771 = vadd.xlane.f32.xlu0 %v1770
        %v1772 = vpop.xlane.xlu0 %1771
        %v1773 = vsel %vm1283, %v1687, 0.0
        %1774 = vadd.xlane.f32.xlu0 %v1773
        %v1775 = vpop.xlane.xlu0 %1774
        %v1776 = vsel %vm1283, %v1688, 0.0
        %1777 = vadd.xlane.f32.xlu0 %v1776
        %v1778 = vpop.xlane.xlu0 %1777
        %v1779 = vsel %vm1283, %v1689, 0.0
        %1780 = vadd.xlane.f32.xlu0 %v1779
        %v1781 = vpop.xlane.xlu0 %1780
        %v1782 = vsel %vm1283, %v1690, 0.0
        %1783 = vadd.xlane.f32.xlu0 %v1782
        %v1784 = vpop.xlane.xlu0 %1783
        %v1785 = vsel %vm1283, %v1691, 0.0
        %1786 = vadd.xlane.f32.xlu0 %v1785
        %v1787 = vpop.xlane.xlu0 %1786
        %v1820 = vlaneseq
        %v1821 = vshrl.u32 %v1820, 7
        %v1822 = vsub.s32 %v1391, %v1821
        %v1823 = vrot.slane %v1694, %v1822
        %v1824 = vadd.s32 %v1391, 4294967288
        %v1825 = vlaneseq
        %v1826 = vshrl.u32 %v1825, 7
        %v1827 = vsub.s32 %v1824, %v1826
        %v1828 = vrot.slane %v1697, %v1827
        %vm1829 = vcmask 130112
        %v1830 = vsel %vm1829, %v1828, %v1823
        %v1831 = vadd.s32 %v1391, 4294967280
        %v1832 = vlaneseq
        %v1833 = vshrl.u32 %v1832, 7
        %v1834 = vsub.s32 %v1831, %v1833
        %v1835 = vrot.slane %v1700, %v1834
        %vm1836 = vcmask 195712
        %v1837 = vsel %vm1836, %v1835, %v1830
        %v1838 = vadd.s32 %v1391, 4294967272
        %v1839 = vlaneseq
        %v1840 = vshrl.u32 %v1839, 7
        %v1841 = vsub.s32 %v1838, %v1840
        %v1842 = vrot.slane %v1703, %v1841
        %vm1843 = vcmask 261312
        %v1844 = vsel %vm1843, %v1842, %v1837
        %v1845 = vlaneseq
        %v1846 = vshrl.u32 %v1845, 7
        %v1847 = vsub.s32 %v1391, %v1846
        %v1848 = vrot.slane %v1706, %v1847
        %v1849 = vlaneseq
        %v1850 = vshrl.u32 %v1849, 7
        %v1851 = vsub.s32 %v1824, %v1850
        %v1852 = vrot.slane %v1709, %v1851
        %v1853 = vsel %vm1829, %v1852, %v1848
        %v1854 = vlaneseq
        %v1855 = vshrl.u32 %v1854, 7
        %v1856 = vsub.s32 %v1831, %v1855
        %v1857 = vrot.slane %v1712, %v1856
        %v1858 = vsel %vm1836, %v1857, %v1853
        %v1859 = vlaneseq
        %v1860 = vshrl.u32 %v1859, 7
        %v1861 = vsub.s32 %v1838, %v1860
        %v1862 = vrot.slane %v1715, %v1861
        %v1863 = vsel %vm1843, %v1862, %v1858
        %v1864 = vlaneseq
        %v1865 = vshrl.u32 %v1864, 7
        %v1866 = vsub.s32 %v1391, %v1865
        %v1867 = vrot.slane %v1718, %v1866
        %v1868 = vlaneseq
        %v1869 = vshrl.u32 %v1868, 7
        %v1870 = vsub.s32 %v1824, %v1869
        %v1871 = vrot.slane %v1721, %v1870
        %v1872 = vsel %vm1829, %v1871, %v1867
        %v1873 = vlaneseq
        %v1874 = vshrl.u32 %v1873, 7
        %v1875 = vsub.s32 %v1831, %v1874
        %v1876 = vrot.slane %v1724, %v1875
        %v1877 = vsel %vm1836, %v1876, %v1872
        %v1878 = vlaneseq
        %v1879 = vshrl.u32 %v1878, 7
        %v1880 = vsub.s32 %v1838, %v1879
        %v1881 = vrot.slane %v1727, %v1880
        %v1882 = vsel %vm1843, %v1881, %v1877
        %v1883 = vlaneseq
        %v1884 = vshrl.u32 %v1883, 7
        %v1885 = vsub.s32 %v1391, %v1884
        %v1886 = vrot.slane %v1730, %v1885
        %v1887 = vlaneseq
        %v1888 = vshrl.u32 %v1887, 7
        %v1889 = vsub.s32 %v1824, %v1888
        %v1890 = vrot.slane %v1733, %v1889
        %v1891 = vsel %vm1829, %v1890, %v1886
        %v1892 = vlaneseq
        %v1893 = vshrl.u32 %v1892, 7
        %v1894 = vsub.s32 %v1831, %v1893
        %v1895 = vrot.slane %v1736, %v1894
        %v1896 = vsel %vm1836, %v1895, %v1891
        %v1897 = vlaneseq
        %v1898 = vshrl.u32 %v1897, 7
        %v1899 = vsub.s32 %v1838, %v1898
        %v1900 = vrot.slane %v1739, %v1899
        %v1901 = vsel %vm1843, %v1900, %v1896
        %v1902 = vlaneseq
        %v1903 = vshrl.u32 %v1902, 7
        %v1904 = vsub.s32 %v1391, %v1903
        %v1905 = vrot.slane %v1742, %v1904
        %v1906 = vlaneseq
        %v1907 = vshrl.u32 %v1906, 7
        %v1908 = vsub.s32 %v1824, %v1907
        %v1909 = vrot.slane %v1745, %v1908
        %v1910 = vsel %vm1829, %v1909, %v1905
        %v1911 = vlaneseq
        %v1912 = vshrl.u32 %v1911, 7
        %v1913 = vsub.s32 %v1831, %v1912
        %v1914 = vrot.slane %v1748, %v1913
        %v1915 = vsel %vm1836, %v1914, %v1910
        %v1916 = vlaneseq
        %v1917 = vshrl.u32 %v1916, 7
        %v1918 = vsub.s32 %v1838, %v1917
        %v1919 = vrot.slane %v1751, %v1918
        %v1920 = vsel %vm1843, %v1919, %v1915
        %v1921 = vlaneseq
        %v1922 = vshrl.u32 %v1921, 7
        %v1923 = vsub.s32 %v1391, %v1922
        %v1924 = vrot.slane %v1754, %v1923
        %v1925 = vlaneseq
        %v1926 = vshrl.u32 %v1925, 7
        %v1927 = vsub.s32 %v1824, %v1926
        %v1928 = vrot.slane %v1757, %v1927
        %v1929 = vsel %vm1829, %v1928, %v1924
        %v1930 = vlaneseq
        %v1931 = vshrl.u32 %v1930, 7
        %v1932 = vsub.s32 %v1831, %v1931
        %v1933 = vrot.slane %v1760, %v1932
        %v1934 = vsel %vm1836, %v1933, %v1929
        %v1935 = vlaneseq
        %v1936 = vshrl.u32 %v1935, 7
        %v1937 = vsub.s32 %v1838, %v1936
        %v1938 = vrot.slane %v1763, %v1937
        %v1939 = vsel %vm1843, %v1938, %v1934
        %v1940 = vlaneseq
        %v1941 = vshrl.u32 %v1940, 7
        %v1942 = vsub.s32 %v1391, %v1941
        %v1943 = vrot.slane %v1766, %v1942
        %v1944 = vlaneseq
        %v1945 = vshrl.u32 %v1944, 7
        %v1946 = vsub.s32 %v1824, %v1945
        %v1947 = vrot.slane %v1769, %v1946
        %v1948 = vsel %vm1829, %v1947, %v1943
        %v1949 = vlaneseq
        %v1950 = vshrl.u32 %v1949, 7
        %v1951 = vsub.s32 %v1831, %v1950
        %v1952 = vrot.slane %v1772, %v1951
        %v1953 = vsel %vm1836, %v1952, %v1948
        %v1954 = vlaneseq
        %v1955 = vshrl.u32 %v1954, 7
        %v1956 = vsub.s32 %v1838, %v1955
        %v1957 = vrot.slane %v1775, %v1956
        %v1958 = vsel %vm1843, %v1957, %v1953
        %v1959 = vlaneseq
        %v1960 = vshrl.u32 %v1959, 7
        %v1961 = vsub.s32 %v1391, %v1960
        %v1962 = vrot.slane %v1778, %v1961
        %v1963 = vlaneseq
        %v1964 = vshrl.u32 %v1963, 7
        %v1965 = vsub.s32 %v1824, %v1964
        %v1966 = vrot.slane %v1781, %v1965
        %v1967 = vsel %vm1829, %v1966, %v1962
        %v1968 = vlaneseq
        %v1969 = vshrl.u32 %v1968, 7
        %v1970 = vsub.s32 %v1831, %v1969
        %v1971 = vrot.slane %v1784, %v1970
        %v1972 = vsel %vm1836, %v1971, %v1967
        %v1973 = vlaneseq
        %v1974 = vshrl.u32 %v1973, 7
        %v1975 = vsub.s32 %v1838, %v1974
        %v1976 = vrot.slane %v1787, %v1975
        %v1977 = vsel %vm1843, %v1976, %v1972
        %vm1978 = vcmask 1041409
        %v1979 = vsel %vm1978, %v1863, %v1844
        %vm1980 = vcmask 1042434
        %v1981 = vsel %vm1980, %v1882, %v1979
        %vm1982 = vcmask 1043459
        %v1983 = vsel %vm1982, %v1901, %v1981
        %vm1984 = vcmask 1044484
        %v1985 = vsel %vm1984, %v1920, %v1983
        %vm1986 = vcmask 1045509
        %v1987 = vsel %vm1986, %v1939, %v1985
        %vm1988 = vcmask 1046534
        %v1989 = vsel %vm1988, %v1958, %v1987
        %vm1990 = vcmask 1047559
        %v1991 = vsel %vm1990, %v1977, %v1989
        %vm1993 = vcmask 261120
        %1994 = vst.msk [vmem:[%s155] sm:$0xff] %vm1993, %v1991
        %s1995 = sand.u32 %s76, 1
        %s1996 = scalar_lea.sflag [#allocation3], %s1995
        %s1997 = sand.u32 %s76, 1
        %s1998 = smul.addr %s1997, 8
        %s1999 = scalar_lea.vmem [#allocation2], %s1998
        // Predicated region
        $region29: #{tpu_custom_call.1} parent=27 // pred_check
          %p2000 = pneg %p86
        $region30: #{tpu_custom_call.1} parent=27 // pred_check_branch
          %2002 = sbr.rel (%p2000) target = $region32
        $region31: #{tpu_custom_call.1} parent=27 // pred_region
          %s2004 = ssub.s32 128, 128
          %2005 = vsyncadd %s1996, %s2004
          %s2006 = smul.addr %s16, 128
          %s2007 = scalar_lea.hbm %s2, %s2006
          %s2009 = sshll.u32 %s1999, 4
          %s2010 = int_to_ptr.vmem [resolvable:$true] %s2009
          %2012 = dma.vmem_to_hbm [thread:$0]  %s2010, 128, %s2007, %s1996
        $region32: #{tpu_custom_call.1} parent=27 // pred_fallthru
          _
      $region28: #{tpu_custom_call.1} parent=5 // pred_fallthru
        _
      %p2013 = scmp.le.s32.totalorder 2, %s11
      // Predicated region
      $region33: #{tpu_custom_call.1} parent=5 // pred_check
        %p2014 = pneg %p2013
      $region34: #{tpu_custom_call.1} parent=5 // pred_check_branch
        %2016 = sbr.rel (%p2014) target = $region36
      $region35: #{tpu_custom_call.1} parent=5 // pred_region
        %s2017 = ssub.s32 %s11, 2
        // Predicated region
        $region37: #{tpu_custom_call.1} parent=35 // pred_check
          %p2018 = pneg %p92
        $region38: #{tpu_custom_call.1} parent=35 // pred_check_branch
          %2020 = sbr.rel (%p2018) target = $region40
        $region39: #{tpu_custom_call.1} parent=35 // pred_region
          %s2021 = sand.u32 %s77, 1
          %s2022 = scalar_lea.sflag [#allocation3], %s2021
          %s2023 = sand.u32 %s77, 1
          %s2024 = smul.addr %s2023, 8
          %s2025 = scalar_lea.vmem [#allocation2], %s2024
          %2026 = dma.done %s2022, 128
        $region40: #{tpu_custom_call.1} parent=35 // pred_fallthru
          _
      $region36: #{tpu_custom_call.1} parent=5 // pred_fallthru
        _
    $region6: #{tpu_custom_call.1} parent=1 // loop_footer
      %s15 = sadd.s32 1, %s11
    $region7: #{tpu_custom_call.1} parent=1 // loop_footer_branch
      %10 = sbr.rel target = $region3
    $region8: #{tpu_custom_call.1} parent=1 // loop_exit
      _
    %2027 = vsyncpa [#allocation3], 1
    %s2028 = scalar_lea.sflag [#allocation3], 1
    %2029 = vsyncpa %s2028, 1

</llo_original>
